<compile_context>
chip_gen: v7x
topology: tpu7x:2x2x1
jax: 0.10.0
libtpu: 0.0.40
codegen_flags: <defaults>
</compile_context>

<pallas_src>
import functools

import jax
import jax.numpy as jnp
from jax.experimental import pallas as pl
from jax.experimental.pallas import tpu as pltpu

_EPS = 1e-5
_K = 3        # kernel_size
_LANE = 128
_SUBLANE = 8


# --------------------------------------------------------------------------- #
# kernels
# --------------------------------------------------------------------------- #
def _valid_rows_mask(num_rows, l, lp):
    """(num_rows, 1) bool mask: True on real conv-output rows, False on halo/pad."""
    pos = jax.lax.broadcasted_iota(jnp.int32, (num_rows, 1), 0) % lp
    return jnp.logical_and(pos >= 1, pos <= l)


def _shifted_tap_conv(v, w_ref, bias, valid):
    """3-tap conv on the padded row grid: out[r] = v[r-1]@W0 + v[r]@W1 + v[r+1]@W2 + b.

    v:     (R, Cin)  activations on the padded/flattened row grid (halo rows = 0)
    w_ref: (3, Cin, Cout) per-tap weights
    Result has halo / alignment rows zeroed (so stats can be taken directly).
    """
    f32 = jnp.float32
    fp = w_ref.shape[2]
    # three per-tap MXU matmuls, f32 accumulation; M = all rows of the tile.
    y0 = jnp.dot(v, w_ref[0], preferred_element_type=f32)
    y1 = jnp.dot(v, w_ref[1], preferred_element_type=f32)
    y2 = jnp.dot(v, w_ref[2], preferred_element_type=f32)
    zrow = jnp.zeros((1, fp), f32)
    y0_shift = jnp.concatenate([zrow, y0[:-1, :]], axis=0)   # y0_shift[r] = y0[r-1]
    y2_shift = jnp.concatenate([y2[1:, :], zrow], axis=0)    # y2_shift[r] = y2[r+1]
    out = y0_shift + y1 + y2_shift + bias
    return jnp.where(valid, out, 0.0)


def _conv1_stats_kernel(x_ref, w_ref, b_ref, h_ref, stats_ref, *, l, lp):
    """conv1 + fused single-pass sum / sum-of-squares partials for BN1."""
    r = x_ref.shape[0]
    valid = _valid_rows_mask(r, l, lp)
    h = _shifted_tap_conv(x_ref[...], w_ref, b_ref[...], valid)
    h_ref[...] = h
    s = jnp.concatenate([jnp.sum(h, axis=0, keepdims=True),
                         jnp.sum(h * h, axis=0, keepdims=True)], axis=0)   # (2, Fp)
    stats_ref[...] = s[None]                                               # (1, 2, Fp)


def _bn1_relu_conv2_stats_kernel(h_ref, sc_ref, sh_ref, w_ref, b_ref,
                                 o_ref, stats_ref, *, l, lp):
    """BN1 (folded scale*x+shift) + ReLU + conv2 + BN2 stats partials."""
    r = h_ref.shape[0]
    valid = _valid_rows_mask(r, l, lp)
    # BatchNorm folded to a single FMA, then ReLU; re-zero halo rows so they act
    # as the conv2 zero padding.
    a = jnp.maximum(h_ref[...] * sc_ref[...] + sh_ref[...], 0.0)
    a = jnp.where(valid, a, 0.0)
    o = _shifted_tap_conv(a, w_ref, b_ref[...], valid)
    o_ref[...] = o
    s = jnp.concatenate([jnp.sum(o, axis=0, keepdims=True),
                         jnp.sum(o * o, axis=0, keepdims=True)], axis=0)
    stats_ref[...] = s[None]


def _bn2_relu_kernel(o_ref, sc_ref, sh_ref, out_ref):
    out_ref[...] = jnp.maximum(o_ref[...] * sc_ref[...] + sh_ref[...], 0.0)


def _bn2_shortcut_relu_kernel(o_ref, sc_ref, sh_ref, res_ref, out_ref):
    out_ref[...] = jnp.maximum(
        o_ref[...] * sc_ref[...] + sh_ref[...] + res_ref[...], 0.0)


# --------------------------------------------------------------------------- #
# wrapper
# --------------------------------------------------------------------------- #
def _round_up(x, m):
    return (x + m - 1) // m * m


def _pick_tb(b, cap):
    tb = 1
    for d in range(1, min(b, cap) + 1):
        if b % d == 0:
            tb = d
    return tb


@functools.partial(jax.jit, static_argnames=("shortcut", "block_b"))
def conv_block_forward(x_ncl, params, *, shortcut: bool = False, block_b: int = 8):
    """x_ncl: (B, C, L) float32 (PyTorch Conv1d layout). Returns (B, F, L)."""
    B, C, L = x_ncl.shape
    F = params["w1"].shape[0]
    assert params["w1"].shape[2] == _K and params["w2"].shape[2] == _K
    if shortcut and C != F:
        raise ValueError("identity shortcut requires input_dim == n_filters")
    # TODO(synk): `downsampling` is an arbitrary nn.Module in PyTorch; only the
    # identity shortcut (downsampling=None) is implemented.

    f32 = jnp.float32
    Cp = _round_up(C, _LANE)              # lane-dense input channels
    Fp = _round_up(F, _LANE)              # lane-dense output channels
    Lp = _round_up(L + 2, _SUBLANE)       # per-example padded/aligned row count
    TB = _pick_tb(B, block_b)             # batch examples per grid step
    n_tiles = B // TB
    rows = B * Lp
    blk_rows = TB * Lp                    # multiple of 8 by construction

    # NCL -> BLC; add halo row in front, halo + alignment rows behind,
    # pad channels to 128 lanes, then flatten to the 2-D row grid.
    x_blc = jnp.transpose(x_ncl, (0, 2, 1)).astype(f32)
    xpad = jnp.pad(x_blc, ((0, 0), (1, Lp - L - 1), (0, Cp - C))).reshape(rows, Cp)

    # Conv weights (F, Cin, K) -> per-tap matmul weights (K, Cin_p, F_p).
    w1m = jnp.pad(jnp.transpose(params["w1"], (2, 1, 0)).astype(f32),
                  ((0, 0), (0, Cp - C), (0, Fp - F)))
    w2m = jnp.pad(jnp.transpose(params["w2"], (2, 1, 0)).astype(f32),
                  ((0, 0), (0, Fp - F), (0, Fp - F)))
    b1p = jnp.pad(params["b1"].astype(f32), (0, Fp - F)).reshape(1, Fp)
    b2p = jnp.pad(params["b2"].astype(f32), (0, Fp - F)).reshape(1, Fp)
    g1p = jnp.pad(params["g1"].astype(f32), (0, Fp - F))
    g2p = jnp.pad(params["g2"].astype(f32), (0, Fp - F))
    be1p = jnp.pad(params["be1"].astype(f32), (0, Fp - F))
    be2p = jnp.pad(params["be2"].astype(f32), (0, Fp - F))

    cparams = pltpu.CompilerParams(dimension_semantics=("parallel",),
                                   vmem_limit_bytes=32 * 1024 * 1024)

    def rows_spec(width):
        return pl.BlockSpec((blk_rows, width), lambda i: (i, 0))

    def const_spec(*shape):
        return pl.BlockSpec(shape, lambda i: (0,) * len(shape))

    stats_spec = pl.BlockSpec((1, 2, Fp), lambda i: (i, 0, 0))
    stats_shape = jax.ShapeDtypeStruct((n_tiles, 2, Fp), f32)

    # -- pass 1: conv1 + BN1 stats partials ----------------------------------
    h, stats1 = pl.pallas_call(
        functools.partial(_conv1_stats_kernel, l=L, lp=Lp),
        grid=(n_tiles,),
        in_specs=[rows_spec(Cp), const_spec(3, Cp, Fp), const_spec(1, Fp)],
        out_specs=(rows_spec(Fp), stats_spec),
        out_shape=(jax.ShapeDtypeStruct((rows, Fp), f32), stats_shape),
        compiler_params=cparams,
    )(xpad, w1m, b1p)

    cnt = float(B * L)

    def fold_bn(stats, gamma, beta):
        mean = jnp.sum(stats[:, 0, :], axis=0) / cnt
        var = jnp.maximum(jnp.sum(stats[:, 1, :], axis=0) / cnt - mean * mean, 0.0)
        scale = gamma * jax.lax.rsqrt(var + _EPS)
        shift = beta - mean * scale
        return scale.reshape(1, Fp), shift.reshape(1, Fp)

    sc1, sh1 = fold_bn(stats1, g1p, be1p)

    # -- pass 2: BN1 apply + ReLU + conv2 + BN2 stats partials ----------------
    o, stats2 = pl.pallas_call(
        functools.partial(_bn1_relu_conv2_stats_kernel, l=L, lp=Lp),
        grid=(n_tiles,),
        in_specs=[rows_spec(Fp), const_spec(1, Fp), const_spec(1, Fp),
                  const_spec(3, Fp, Fp), const_spec(1, Fp)],
        out_specs=(rows_spec(Fp), stats_spec),
        out_shape=(jax.ShapeDtypeStruct((rows, Fp), f32), stats_shape),
        compiler_params=cparams,
    )(h, sc1, sh1, w2m, b2p)

    sc2, sh2 = fold_bn(stats2, g2p, be2p)

    # -- pass 3: BN2 apply (+ shortcut) + ReLU --------------------------------
    if shortcut:
        res = jnp.pad(x_blc, ((0, 0), (1, Lp - L - 1), (0, Fp - C))).reshape(rows, Fp)
        out_flat = pl.pallas_call(
            _bn2_shortcut_relu_kernel,
            grid=(n_tiles,),
            in_specs=[rows_spec(Fp), const_spec(1, Fp), const_spec(1, Fp),
                      rows_spec(Fp)],
            out_specs=rows_spec(Fp),
            out_shape=jax.ShapeDtypeStruct((rows, Fp), f32),
            compiler_params=cparams,
        )(o, sc2, sh2, res)
    else:
        out_flat = pl.pallas_call(
            _bn2_relu_kernel,
            grid=(n_tiles,),
            in_specs=[rows_spec(Fp), const_spec(1, Fp), const_spec(1, Fp)],
            out_specs=rows_spec(Fp),
            out_shape=jax.ShapeDtypeStruct((rows, Fp), f32),
            compiler_params=cparams,
        )(o, sc2, sh2)

    # strip halo/alignment rows and padded lanes, back to (B, F, L)
    out = out_flat.reshape(B, Lp, Fp)[:, 1:L + 1, :F]
    return jnp.transpose(out, (0, 2, 1))


# --------------------------------------------------------------------------- #
# pure-JAX reference (matches the PyTorch forward in train mode)
# --------------------------------------------------------------------------- #
def _reference(x_ncl, params, *, shortcut: bool = False):
    def conv1d(x, w, b):
        y = jax.lax.conv_general_dilated(
            x, w, window_strides=(1,), padding=((1, 1),),
            dimension_numbers=("NCH", "OIH", "NCH"))
        return y + b[None, :, None]

    def bn_train(x, g, be):
        m = jnp.mean(x, axis=(0, 2), keepdims=True)
        v = jnp.mean((x - m) ** 2, axis=(0, 2), keepdims=True)
        return (x - m) * jax.lax.rsqrt(v + _EPS) * g[None, :, None] + be[None, :, None]

    h = jnp.maximum(bn_train(conv1d(x_ncl, params["w1"], params["b1"]),
                             params["g1"], params["be1"]), 0.0)
    o = bn_train(conv1d(h, params["w2"], params["b2"]), params["g2"], params["be2"])
    if shortcut:
        o = o + x_ncl
    return jnp.maximum(o, 0.0)


# --------------------------------------------------------------------------- #
if __name__ == "__main__":
    key = jax.random.PRNGKey(0)
    kx1, kp1, kx2, kp2 = jax.random.split(key, 4)

    def make_params(k, c, f):
        k1, kb1, k2, kb2, kg1, kg2, kbe1, kbe2 = jax.random.split(k, 8)
        return {
            "w1": jax.random.normal(k1, (f, c, _K), jnp.float32) * (2.0 / (c * _K)) ** 0.5,
            "b1": 0.01 * jax.random.normal(kb1, (f,), jnp.float32),
            "g1": 1.0 + 0.1 * jax.random.normal(kg1, (f,), jnp.float32),
            "be1": 0.05 * jax.random.normal(kbe1, (f,), jnp.float32),
            "w2": jax.random.normal(k2, (f, f, _K), jnp.float32) * (2.0 / (f * _K)) ** 0.5,
            "b2": 0.01 * jax.random.normal(kb2, (f,), jnp.float32),
            "g2": 1.0 + 0.1 * jax.random.normal(kg2, (f,), jnp.float32),
            "be2": 0.05 * jax.random.normal(kbe2, (f,), jnp.float32),
        }

    # test 1: plain block (input_dim != n_filters), grid of 2 batch tiles
    B, C, L, F = 4, 16, 16, 32
    x1 = jax.random.normal(kx1, (B, C, L), jnp.float32)
    p1 = make_params(kp1, C, F)
    out1 = jax.block_until_ready(conv_block_forward(x1, p1, shortcut=False, block_b=2))
    ref1 = jax.block_until_ready(_reference(x1, p1, shortcut=False))
    assert out1.shape == (B, F, L), out1.shape
    assert jnp.allclose(out1, ref1, rtol=1e-4, atol=1e-4), \
        float(jnp.max(jnp.abs(out1 - ref1)))

    # test 2: identity shortcut (requires input_dim == n_filters)
    C2 = F
    x2 = jax.random.normal(kx2, (B, C2, L), jnp.float32)
    p2 = make_params(kp2, C2, F)
    out2 = jax.block_until_ready(conv_block_forward(x2, p2, shortcut=True, block_b=2))
    ref2 = jax.block_until_ready(_reference(x2, p2, shortcut=True))
    assert out2.shape == (B, F, L), out2.shape
    assert jnp.allclose(out2, ref2, rtol=1e-4, atol=1e-4), \
        float(jnp.max(jnp.abs(out2 - ref2)))

    print("KERNEL_OK")
</pallas_src>

<mosaic_0001>
module attributes {stable_mosaic.version = 11 : i64} {
  func.func @_conv1_stats_kernel(%arg0: i32, %arg1: memref<48x128xf32, #tpu.memory_space<vmem>>, %arg2: memref<3x128x128xf32, #tpu.memory_space<vmem>>, %arg3: memref<1x128xf32, #tpu.memory_space<vmem>>, %arg4: memref<48x128xf32, #tpu.memory_space<vmem>>, %arg5: memref<1x2x128xf32, #tpu.memory_space<vmem>>) attributes {dimension_semantics = [#tpu.dimension_semantics<parallel>], iteration_bounds = array<i64: 2>, scalar_prefetch = 0 : i64, scratch_operands = 0 : i64, tpu.core_type = #tpu.core_type<tc>, window_params = [{transform_indices = @transform_0, window_bounds = array<i64: 48, 128>}, {pipeline_mode = #tpu.pipeline_mode<synchronous>, transform_indices = @transform_1, window_bounds = array<i64: 3, 128, 128>}, {pipeline_mode = #tpu.pipeline_mode<synchronous>, transform_indices = @transform_2, window_bounds = array<i64: 1, 128>}, {transform_indices = @transform_3, window_bounds = array<i64: 48, 128>}, {transform_indices = @transform_4, window_bounds = array<i64: 1, 2, 128>}]} {
    %0 = tpu.iota {dimensions = array<i32: 0>} : vector<48x1xi32>
    %c24_i32 = arith.constant 24 : i32
    %c0_i32 = arith.constant 0 : i32
    %1 = arith.cmpi eq, %c24_i32, %c0_i32 : i32
    %c1_i32 = arith.constant 1 : i32
    %2 = arith.select %1, %c1_i32, %c24_i32 : i32
    %3 = vector.broadcast %2 : i32 to vector<48x1xi32>
    %4 = arith.remsi %0, %3 : vector<48x1xi32>
    %c0_i32_0 = arith.constant 0 : i32
    %5 = vector.broadcast %c0_i32_0 : i32 to vector<48x1xi32>
    %6 = arith.cmpi ne, %4, %5 : vector<48x1xi32>
    %c0_i32_1 = arith.constant 0 : i32
    %7 = vector.broadcast %c0_i32_1 : i32 to vector<48x1xi32>
    %8 = arith.cmpi slt, %4, %7 : vector<48x1xi32>
    %c0_i32_2 = arith.constant 0 : i32
    %9 = arith.cmpi slt, %2, %c0_i32_2 : i32
    %10 = vector.broadcast %9 : i1 to vector<48x1xi1>
    %11 = vector.broadcast %10 : vector<48x1xi1> to vector<48x1xi1>
    %12 = arith.xori %8, %11 : vector<48x1xi1>
    %13 = arith.andi %12, %6 : vector<48x1xi1>
    %14 = vector.broadcast %2 : i32 to vector<48x1xi32>
    %15 = arith.addi %4, %14 : vector<48x1xi32>
    %16 = arith.select %13, %15, %4 : vector<48x1xi1>, vector<48x1xi32>
    %c1_i32_3 = arith.constant 1 : i32
    %17 = vector.broadcast %c1_i32_3 : i32 to vector<48x1xi32>
    %18 = arith.cmpi sge, %16, %17 : vector<48x1xi32>
    %c16_i32 = arith.constant 16 : i32
    %19 = vector.broadcast %c16_i32 : i32 to vector<48x1xi32>
    %20 = arith.cmpi sle, %16, %19 : vector<48x1xi32>
    %21 = arith.andi %18, %20 : vector<48x1xi1>
    %c0 = arith.constant 0 : index
    %c0_4 = arith.constant 0 : index
    %22 = vector.load %arg1[%c0, %c0_4] : memref<48x128xf32, #tpu.memory_space<vmem>>, vector<48x128xf32>
    %c0_5 = arith.constant 0 : index
    %c0_6 = arith.constant 0 : index
    %23 = vector.load %arg3[%c0_5, %c0_6] : memref<1x128xf32, #tpu.memory_space<vmem>>, vector<1x128xf32>
    %c0_7 = arith.constant 0 : index
    %c0_8 = arith.constant 0 : index
    %c0_9 = arith.constant 0 : index
    %24 = vector.load %arg2[%c0_7, %c0_8, %c0_9] : memref<3x128x128xf32, #tpu.memory_space<vmem>>, vector<1x128x128xf32>
    %25 = vector.shape_cast %24 : vector<1x128x128xf32> to vector<128x128xf32>
    %cst = arith.constant dense<0.000000e+00> : vector<48x128xf32>
    %26 = tpu.matmul %22, %25, %cst {dimension_numbers = #tpu.dot_dimension_numbers<[1], [0], [0], [1], [0, 0, 1, 1], [], []>} : vector<48x128xf32>, vector<128x128xf32>, vector<48x128xf32> -> vector<48x128xf32>
    %c1 = arith.constant 1 : index
    %c0_10 = arith.constant 0 : index
    %c0_11 = arith.constant 0 : index
    %27 = vector.load %arg2[%c1, %c0_10, %c0_11] : memref<3x128x128xf32, #tpu.memory_space<vmem>>, vector<1x128x128xf32>
    %28 = vector.shape_cast %27 : vector<1x128x128xf32> to vector<128x128xf32>
    %cst_12 = arith.constant dense<0.000000e+00> : vector<48x128xf32>
    %29 = tpu.matmul %22, %28, %cst_12 {dimension_numbers = #tpu.dot_dimension_numbers<[1], [0], [0], [1], [0, 0, 1, 1], [], []>} : vector<48x128xf32>, vector<128x128xf32>, vector<48x128xf32> -> vector<48x128xf32>
    %c2 = arith.constant 2 : index
    %c0_13 = arith.constant 0 : index
    %c0_14 = arith.constant 0 : index
    %30 = vector.load %arg2[%c2, %c0_13, %c0_14] : memref<3x128x128xf32, #tpu.memory_space<vmem>>, vector<1x128x128xf32>
    %31 = vector.shape_cast %30 : vector<1x128x128xf32> to vector<128x128xf32>
    %cst_15 = arith.constant dense<0.000000e+00> : vector<48x128xf32>
    %32 = tpu.matmul %22, %31, %cst_15 {dimension_numbers = #tpu.dot_dimension_numbers<[1], [0], [0], [1], [0, 0, 1, 1], [], []>} : vector<48x128xf32>, vector<128x128xf32>, vector<48x128xf32> -> vector<48x128xf32>
    %cst_16 = arith.constant 0.000000e+00 : f32
    %33 = vector.broadcast %cst_16 : f32 to vector<1x128xf32>
    %34 = vector.extract_strided_slice %26 {offsets = [0, 0], sizes = [47, 128], strides = [1, 1]} : vector<48x128xf32> to vector<47x128xf32>
    %35 = tpu.concatenate %33, %34 in 0 : vector<1x128xf32>, vector<47x128xf32> -> vector<48x128xf32>
    %36 = vector.extract_strided_slice %32 {offsets = [1, 0], sizes = [47, 128], strides = [1, 1]} : vector<48x128xf32> to vector<47x128xf32>
    %37 = tpu.concatenate %36, %33 in 0 : vector<47x128xf32>, vector<1x128xf32> -> vector<48x128xf32>
    %38 = arith.addf %35, %29 : vector<48x128xf32>
    %39 = arith.addf %38, %37 : vector<48x128xf32>
    %40 = vector.broadcast %23 : vector<1x128xf32> to vector<48x128xf32>
    %41 = arith.addf %39, %40 : vector<48x128xf32>
    %cst_17 = arith.constant 0.000000e+00 : f32
    %42 = vector.shape_cast %21 : vector<48x1xi1> to vector<48x1xi1>
    %43 = vector.broadcast %42 : vector<48x1xi1> to vector<48x128xi1>
    %44 = vector.broadcast %cst_17 : f32 to vector<48x128xf32>
    %45 = arith.select %43, %41, %44 : vector<48x128xi1>, vector<48x128xf32>
    %c0_18 = arith.constant 0 : index
    %c0_19 = arith.constant 0 : index
    %46 = vector.load %arg4[%c0_18, %c0_19] : memref<48x128xf32, #tpu.memory_space<vmem>>, vector<48x128xf32>
    tpu.vector_store %arg4[%c0_18, %c0_19], %45 {strides = array<i32>} : memref<48x128xf32, #tpu.memory_space<vmem>>, vector<48x128xf32>,
    %cst_20 = arith.constant dense<0.000000e+00> : vector<128xf32>
    %47 = vector.multi_reduction <add>, %45, %cst_20 [0] : vector<48x128xf32> to vector<128xf32>
    %48 = vector.shape_cast %47 : vector<128xf32> to vector<1x128xf32>
    %49 = arith.mulf %45, %45 : vector<48x128xf32>
    %cst_21 = arith.constant dense<0.000000e+00> : vector<128xf32>
    %50 = vector.multi_reduction <add>, %49, %cst_21 [0] : vector<48x128xf32> to vector<128xf32>
    %51 = vector.shape_cast %50 : vector<128xf32> to vector<1x128xf32>
    %52 = tpu.concatenate %48, %51 in 0 : vector<1x128xf32>, vector<1x128xf32> -> vector<2x128xf32>
    %53 = vector.shape_cast %52 : vector<2x128xf32> to vector<1x2x128xf32>
    %c0_22 = arith.constant 0 : index
    %c0_23 = arith.constant 0 : index
    %c0_24 = arith.constant 0 : index
    %54 = vector.load %arg5[%c0_22, %c0_23, %c0_24] : memref<1x2x128xf32, #tpu.memory_space<vmem>>, vector<1x2x128xf32>
    tpu.vector_store %arg5[%c0_22, %c0_23, %c0_24], %53 {strides = array<i32>} : memref<1x2x128xf32, #tpu.memory_space<vmem>>, vector<1x2x128xf32>,
    return
  }
  func.func @transform_0(%arg0: i32) -> (i32, i32) {
    %c0_i32 = arith.constant 0 : i32
    %c0_i32_0 = arith.constant 0 : i32
    return %arg0, %c0_i32 : i32, i32
  }
  func.func @transform_1(%arg0: i32) -> (i32, i32, i32) {
    %c0_i32 = arith.constant 0 : i32
    %c0_i32_0 = arith.constant 0 : i32
    %c0_i32_1 = arith.constant 0 : i32
    %c0_i32_2 = arith.constant 0 : i32
    return %c0_i32, %c0_i32_0, %c0_i32_1 : i32, i32, i32
  }
  func.func @transform_2(%arg0: i32) -> (i32, i32) {
    %c0_i32 = arith.constant 0 : i32
    %c0_i32_0 = arith.constant 0 : i32
    %c0_i32_1 = arith.constant 0 : i32
    return %c0_i32, %c0_i32_0 : i32, i32
  }
  func.func @transform_3(%arg0: i32) -> (i32, i32) {
    %c0_i32 = arith.constant 0 : i32
    %c0_i32_0 = arith.constant 0 : i32
    return %arg0, %c0_i32 : i32, i32
  }
  func.func @transform_4(%arg0: i32) -> (i32, i32, i32) {
    %c0_i32 = arith.constant 0 : i32
    %c0_i32_0 = arith.constant 0 : i32
    %c0_i32_1 = arith.constant 0 : i32
    return %arg0, %c0_i32, %c0_i32_0 : i32, i32, i32
  }
}

module attributes {stable_mosaic.version = 11 : i64} {
  func.func @_bn2_relu_kernel(%arg0: i32, %arg1: memref<48x128xf32, #tpu.memory_space<vmem>>, %arg2: memref<1x128xf32, #tpu.memory_space<vmem>>, %arg3: memref<1x128xf32, #tpu.memory_space<vmem>>, %arg4: memref<48x128xf32, #tpu.memory_space<vmem>>) attributes {dimension_semantics = [#tpu.dimension_semantics<parallel>], iteration_bounds = array<i64: 2>, scalar_prefetch = 0 : i64, scratch_operands = 0 : i64, tpu.core_type = #tpu.core_type<tc>, window_params = [{transform_indices = @transform_0, window_bounds = array<i64: 48, 128>}, {pipeline_mode = #tpu.pipeline_mode<synchronous>, transform_indices = @transform_1, window_bounds = array<i64: 1, 128>}, {pipeline_mode = #tpu.pipeline_mode<synchronous>, transform_indices = @transform_2, window_bounds = array<i64: 1, 128>}, {transform_indices = @transform_3, window_bounds = array<i64: 48, 128>}]} {
    %c0 = arith.constant 0 : index
    %c0_0 = arith.constant 0 : index
    %0 = vector.load %arg1[%c0, %c0_0] : memref<48x128xf32, #tpu.memory_space<vmem>>, vector<48x128xf32>
    %c0_1 = arith.constant 0 : index
    %c0_2 = arith.constant 0 : index
    %1 = vector.load %arg2[%c0_1, %c0_2] : memref<1x128xf32, #tpu.memory_space<vmem>>, vector<1x128xf32>
    %2 = vector.broadcast %1 : vector<1x128xf32> to vector<48x128xf32>
    %3 = arith.mulf %0, %2 : vector<48x128xf32>
    %c0_3 = arith.constant 0 : index
    %c0_4 = arith.constant 0 : index
    %4 = vector.load %arg3[%c0_3, %c0_4] : memref<1x128xf32, #tpu.memory_space<vmem>>, vector<1x128xf32>
    %5 = vector.broadcast %4 : vector<1x128xf32> to vector<48x128xf32>
    %6 = arith.addf %3, %5 : vector<48x128xf32>
    %cst = arith.constant 0.000000e+00 : f32
    %7 = vector.broadcast %cst : f32 to vector<48x128xf32>
    %8 = arith.maximumf %6, %7 : vector<48x128xf32>
    %c0_5 = arith.constant 0 : index
    %c0_6 = arith.constant 0 : index
    %9 = vector.load %arg4[%c0_5, %c0_6] : memref<48x128xf32, #tpu.memory_space<vmem>>, vector<48x128xf32>
    tpu.vector_store %arg4[%c0_5, %c0_6], %8 {strides = array<i32>} : memref<48x128xf32, #tpu.memory_space<vmem>>, vector<48x128xf32>,
    return
  }
  func.func @transform_0(%arg0: i32) -> (i32, i32) {
    %c0_i32 = arith.constant 0 : i32
    %c0_i32_0 = arith.constant 0 : i32
    return %arg0, %c0_i32 : i32, i32
  }
  func.func @transform_1(%arg0: i32) -> (i32, i32) {
    %c0_i32 = arith.constant 0 : i32
    %c0_i32_0 = arith.constant 0 : i32
    %c0_i32_1 = arith.constant 0 : i32
    return %c0_i32, %c0_i32_0 : i32, i32
  }
  func.func @transform_2(%arg0: i32) -> (i32, i32) {
    %c0_i32 = arith.constant 0 : i32
    %c0_i32_0 = arith.constant 0 : i32
    %c0_i32_1 = arith.constant 0 : i32
    return %c0_i32, %c0_i32_0 : i32, i32
  }
  func.func @transform_3(%arg0: i32) -> (i32, i32) {
    %c0_i32 = arith.constant 0 : i32
    %c0_i32_0 = arith.constant 0 : i32
    return %arg0, %c0_i32 : i32, i32
  }
}

module attributes {stable_mosaic.version = 11 : i64} {
  func.func @_bn1_relu_conv2_stats_kernel(%arg0: i32, %arg1: memref<48x128xf32, #tpu.memory_space<vmem>>, %arg2: memref<1x128xf32, #tpu.memory_space<vmem>>, %arg3: memref<1x128xf32, #tpu.memory_space<vmem>>, %arg4: memref<3x128x128xf32, #tpu.memory_space<vmem>>, %arg5: memref<1x128xf32, #tpu.memory_space<vmem>>, %arg6: memref<48x128xf32, #tpu.memory_space<vmem>>, %arg7: memref<1x2x128xf32, #tpu.memory_space<vmem>>) attributes {dimension_semantics = [#tpu.dimension_semantics<parallel>], iteration_bounds = array<i64: 2>, scalar_prefetch = 0 : i64, scratch_operands = 0 : i64, tpu.core_type = #tpu.core_type<tc>, window_params = [{transform_indices = @transform_0, window_bounds = array<i64: 48, 128>}, {pipeline_mode = #tpu.pipeline_mode<synchronous>, transform_indices = @transform_1, window_bounds = array<i64: 1, 128>}, {pipeline_mode = #tpu.pipeline_mode<synchronous>, transform_indices = @transform_2, window_bounds = array<i64: 1, 128>}, {pipeline_mode = #tpu.pipeline_mode<synchronous>, transform_indices = @transform_3, window_bounds = array<i64: 3, 128, 128>}, {pipeline_mode = #tpu.pipeline_mode<synchronous>, transform_indices = @transform_4, window_bounds = array<i64: 1, 128>}, {transform_indices = @transform_5, window_bounds = array<i64: 48, 128>}, {transform_indices = @transform_6, window_bounds = array<i64: 1, 2, 128>}]} {
    %0 = tpu.iota {dimensions = array<i32: 0>} : vector<48x1xi32>
    %c24_i32 = arith.constant 24 : i32
    %c0_i32 = arith.constant 0 : i32
    %1 = arith.cmpi eq, %c24_i32, %c0_i32 : i32
    %c1_i32 = arith.constant 1 : i32
    %2 = arith.select %1, %c1_i32, %c24_i32 : i32
    %3 = vector.broadcast %2 : i32 to vector<48x1xi32>
    %4 = arith.remsi %0, %3 : vector<48x1xi32>
    %c0_i32_0 = arith.constant 0 : i32
    %5 = vector.broadcast %c0_i32_0 : i32 to vector<48x1xi32>
    %6 = arith.cmpi ne, %4, %5 : vector<48x1xi32>
    %c0_i32_1 = arith.constant 0 : i32
    %7 = vector.broadcast %c0_i32_1 : i32 to vector<48x1xi32>
    %8 = arith.cmpi slt, %4, %7 : vector<48x1xi32>
    %c0_i32_2 = arith.constant 0 : i32
    %9 = arith.cmpi slt, %2, %c0_i32_2 : i32
    %10 = vector.broadcast %9 : i1 to vector<48x1xi1>
    %11 = vector.broadcast %10 : vector<48x1xi1> to vector<48x1xi1>
    %12 = arith.xori %8, %11 : vector<48x1xi1>
    %13 = arith.andi %12, %6 : vector<48x1xi1>
    %14 = vector.broadcast %2 : i32 to vector<48x1xi32>
    %15 = arith.addi %4, %14 : vector<48x1xi32>
    %16 = arith.select %13, %15, %4 : vector<48x1xi1>, vector<48x1xi32>
    %c1_i32_3 = arith.constant 1 : i32
    %17 = vector.broadcast %c1_i32_3 : i32 to vector<48x1xi32>
    %18 = arith.cmpi sge, %16, %17 : vector<48x1xi32>
    %c16_i32 = arith.constant 16 : i32
    %19 = vector.broadcast %c16_i32 : i32 to vector<48x1xi32>
    %20 = arith.cmpi sle, %16, %19 : vector<48x1xi32>
    %21 = arith.andi %18, %20 : vector<48x1xi1>
    %c0 = arith.constant 0 : index
    %c0_4 = arith.constant 0 : index
    %22 = vector.load %arg1[%c0, %c0_4] : memref<48x128xf32, #tpu.memory_space<vmem>>, vector<48x128xf32>
    %c0_5 = arith.constant 0 : index
    %c0_6 = arith.constant 0 : index
    %23 = vector.load %arg2[%c0_5, %c0_6] : memref<1x128xf32, #tpu.memory_space<vmem>>, vector<1x128xf32>
    %24 = vector.broadcast %23 : vector<1x128xf32> to vector<48x128xf32>
    %25 = arith.mulf %22, %24 : vector<48x128xf32>
    %c0_7 = arith.constant 0 : index
    %c0_8 = arith.constant 0 : index
    %26 = vector.load %arg3[%c0_7, %c0_8] : memref<1x128xf32, #tpu.memory_space<vmem>>, vector<1x128xf32>
    %27 = vector.broadcast %26 : vector<1x128xf32> to vector<48x128xf32>
    %28 = arith.addf %25, %27 : vector<48x128xf32>
    %cst = arith.constant 0.000000e+00 : f32
    %29 = vector.broadcast %cst : f32 to vector<48x128xf32>
    %30 = arith.maximumf %28, %29 : vector<48x128xf32>
    %cst_9 = arith.constant 0.000000e+00 : f32
    %31 = vector.shape_cast %21 : vector<48x1xi1> to vector<48x1xi1>
    %32 = vector.broadcast %31 : vector<48x1xi1> to vector<48x128xi1>
    %33 = vector.broadcast %cst_9 : f32 to vector<48x128xf32>
    %34 = arith.select %32, %30, %33 : vector<48x128xi1>, vector<48x128xf32>
    %c0_10 = arith.constant 0 : index
    %c0_11 = arith.constant 0 : index
    %35 = vector.load %arg5[%c0_10, %c0_11] : memref<1x128xf32, #tpu.memory_space<vmem>>, vector<1x128xf32>
    %c0_12 = arith.constant 0 : index
    %c0_13 = arith.constant 0 : index
    %c0_14 = arith.constant 0 : index
    %36 = vector.load %arg4[%c0_12, %c0_13, %c0_14] : memref<3x128x128xf32, #tpu.memory_space<vmem>>, vector<1x128x128xf32>
    %37 = vector.shape_cast %36 : vector<1x128x128xf32> to vector<128x128xf32>
    %cst_15 = arith.constant dense<0.000000e+00> : vector<48x128xf32>
    %38 = tpu.matmul %34, %37, %cst_15 {dimension_numbers = #tpu.dot_dimension_numbers<[1], [0], [0], [1], [0, 0, 1, 1], [], []>} : vector<48x128xf32>, vector<128x128xf32>, vector<48x128xf32> -> vector<48x128xf32>
    %c1 = arith.constant 1 : index
    %c0_16 = arith.constant 0 : index
    %c0_17 = arith.constant 0 : index
    %39 = vector.load %arg4[%c1, %c0_16, %c0_17] : memref<3x128x128xf32, #tpu.memory_space<vmem>>, vector<1x128x128xf32>
    %40 = vector.shape_cast %39 : vector<1x128x128xf32> to vector<128x128xf32>
    %cst_18 = arith.constant dense<0.000000e+00> : vector<48x128xf32>
    %41 = tpu.matmul %34, %40, %cst_18 {dimension_numbers = #tpu.dot_dimension_numbers<[1], [0], [0], [1], [0, 0, 1, 1], [], []>} : vector<48x128xf32>, vector<128x128xf32>, vector<48x128xf32> -> vector<48x128xf32>
    %c2 = arith.constant 2 : index
    %c0_19 = arith.constant 0 : index
    %c0_20 = arith.constant 0 : index
    %42 = vector.load %arg4[%c2, %c0_19, %c0_20] : memref<3x128x128xf32, #tpu.memory_space<vmem>>, vector<1x128x128xf32>
    %43 = vector.shape_cast %42 : vector<1x128x128xf32> to vector<128x128xf32>
    %cst_21 = arith.constant dense<0.000000e+00> : vector<48x128xf32>
    %44 = tpu.matmul %34, %43, %cst_21 {dimension_numbers = #tpu.dot_dimension_numbers<[1], [0], [0], [1], [0, 0, 1, 1], [], []>} : vector<48x128xf32>, vector<128x128xf32>, vector<48x128xf32> -> vector<48x128xf32>
    %cst_22 = arith.constant 0.000000e+00 : f32
    %45 = vector.broadcast %cst_22 : f32 to vector<1x128xf32>
    %46 = vector.extract_strided_slice %38 {offsets = [0, 0], sizes = [47, 128], strides = [1, 1]} : vector<48x128xf32> to vector<47x128xf32>
    %47 = tpu.concatenate %45, %46 in 0 : vector<1x128xf32>, vector<47x128xf32> -> vector<48x128xf32>
    %48 = vector.extract_strided_slice %44 {offsets = [1, 0], sizes = [47, 128], strides = [1, 1]} : vector<48x128xf32> to vector<47x128xf32>
    %49 = tpu.concatenate %48, %45 in 0 : vector<47x128xf32>, vector<1x128xf32> -> vector<48x128xf32>
    %50 = arith.addf %47, %41 : vector<48x128xf32>
    %51 = arith.addf %50, %49 : vector<48x128xf32>
    %52 = vector.broadcast %35 : vector<1x128xf32> to vector<48x128xf32>
    %53 = arith.addf %51, %52 : vector<48x128xf32>
    %cst_23 = arith.constant 0.000000e+00 : f32
    %54 = vector.shape_cast %21 : vector<48x1xi1> to vector<48x1xi1>
    %55 = vector.broadcast %54 : vector<48x1xi1> to vector<48x128xi1>
    %56 = vector.broadcast %cst_23 : f32 to vector<48x128xf32>
    %57 = arith.select %55, %53, %56 : vector<48x128xi1>, vector<48x128xf32>
    %c0_24 = arith.constant 0 : index
    %c0_25 = arith.constant 0 : index
    %58 = vector.load %arg6[%c0_24, %c0_25] : memref<48x128xf32, #tpu.memory_space<vmem>>, vector<48x128xf32>
    tpu.vector_store %arg6[%c0_24, %c0_25], %57 {strides = array<i32>} : memref<48x128xf32, #tpu.memory_space<vmem>>, vector<48x128xf32>,
    %cst_26 = arith.constant dense<0.000000e+00> : vector<128xf32>
    %59 = vector.multi_reduction <add>, %57, %cst_26 [0] : vector<48x128xf32> to vector<128xf32>
    %60 = vector.shape_cast %59 : vector<128xf32> to vector<1x128xf32>
    %61 = arith.mulf %57, %57 : vector<48x128xf32>
    %cst_27 = arith.constant dense<0.000000e+00> : vector<128xf32>
    %62 = vector.multi_reduction <add>, %61, %cst_27 [0] : vector<48x128xf32> to vector<128xf32>
    %63 = vector.shape_cast %62 : vector<128xf32> to vector<1x128xf32>
    %64 = tpu.concatenate %60, %63 in 0 : vector<1x128xf32>, vector<1x128xf32> -> vector<2x128xf32>
    %65 = vector.shape_cast %64 : vector<2x128xf32> to vector<1x2x128xf32>
    %c0_28 = arith.constant 0 : index
    %c0_29 = arith.constant 0 : index
    %c0_30 = arith.constant 0 : index
    %66 = vector.load %arg7[%c0_28, %c0_29, %c0_30] : memref<1x2x128xf32, #tpu.memory_space<vmem>>, vector<1x2x128xf32>
    tpu.vector_store %arg7[%c0_28, %c0_29, %c0_30], %65 {strides = array<i32>} : memref<1x2x128xf32, #tpu.memory_space<vmem>>, vector<1x2x128xf32>,
    return
  }
  func.func @transform_0(%arg0: i32) -> (i32, i32) {
    %c0_i32 = arith.constant 0 : i32
    %c0_i32_0 = arith.constant 0 : i32
    return %arg0, %c0_i32 : i32, i32
  }
  func.func @transform_1(%arg0: i32) -> (i32, i32) {
    %c0_i32 = arith.constant 0 : i32
    %c0_i32_0 = arith.constant 0 : i32
    %c0_i32_1 = arith.constant 0 : i32
    return %c0_i32, %c0_i32_0 : i32, i32
  }
  func.func @transform_2(%arg0: i32) -> (i32, i32) {
    %c0_i32 = arith.constant 0 : i32
    %c0_i32_0 = arith.constant 0 : i32
    %c0_i32_1 = arith.constant 0 : i32
    return %c0_i32, %c0_i32_0 : i32, i32
  }
  func.func @transform_3(%arg0: i32) -> (i32, i32, i32) {
    %c0_i32 = arith.constant 0 : i32
    %c0_i32_0 = arith.constant 0 : i32
    %c0_i32_1 = arith.constant 0 : i32
    %c0_i32_2 = arith.constant 0 : i32
    return %c0_i32, %c0_i32_0, %c0_i32_1 : i32, i32, i32
  }
  func.func @transform_4(%arg0: i32) -> (i32, i32) {
    %c0_i32 = arith.constant 0 : i32
    %c0_i32_0 = arith.constant 0 : i32
    %c0_i32_1 = arith.constant 0 : i32
    return %c0_i32, %c0_i32_0 : i32, i32
  }
  func.func @transform_5(%arg0: i32) -> (i32, i32) {
    %c0_i32 = arith.constant 0 : i32
    %c0_i32_0 = arith.constant 0 : i32
    return %arg0, %c0_i32 : i32, i32
  }
  func.func @transform_6(%arg0: i32) -> (i32, i32, i32) {
    %c0_i32 = arith.constant 0 : i32
    %c0_i32_0 = arith.constant 0 : i32
    %c0_i32_1 = arith.constant 0 : i32
    return %arg0, %c0_i32, %c0_i32_0 : i32, i32, i32
  }
}

</mosaic_0001>

<llo_original>
// kernel: conv_block_forward.5
$region0: #{conv_block_forward.5}
  #allocation0 [shape = 'u32[]', space=smem, size = 0x4, offset = 0x4, fixed_abs, tag = 'smem constant byte address 0x4 - core index']
  #allocation1 [shape = 'u32[144,128]{1,0:T(1,128)}', space=vmem, size = 0x12000, scoped, tag = 'internal scratch']
  %s0 = inlined_call_operand.vmem [shape: f32[96,128], index: 0, kind: input, shape index: {}]
  %s1 = inlined_call_operand.vmem [shape: f32[1,128], index: 1, kind: input, shape index: {}]
  %s2 = inlined_call_operand.vmem [shape: f32[1,128], index: 2, kind: input, shape index: {}]
  %s3 = inlined_call_operand.vmem [shape: f32[96,128], index: 3, kind: output, shape index: {}]
  %s4 = sld [smem:[#allocation0]]
  $region45: #{conv_block_forward.5} parent=0
    _
  %s6 = ssub.s32 1, %s4
  %s7 = scalar_select 0, %s6, %s4
  loop: start=0, step=1, limit=4
  $region2: #{conv_block_forward.5} parent=0 // loop_pre_header
    _
  $region3: #{conv_block_forward.5} parent=0 // loop_header
    %s9 = sphi 0, %s13
    %p10 = scmp.ge.s32.totalorder %s9, 4
    %s19 = sphi 0, %s21
    %s22 = sphi 0, %s19
    %s23 = sphi 0, %s22
    %s39 = sphi 0, %s23
    %s43 = sphi 0, %s43
    %s45 = sphi 0, %s43
    %s46 = sphi 0, %s45
    %s60 = sphi 0, %s46
    %s64 = sphi 0, %s64
    %s66 = sphi 0, %s64
    %s67 = sphi 0, %s66
    %s81 = sphi 0, %s67
    %s87 = sphi 0, %s89
    %s90 = sphi 0, %s87
    %s91 = sphi 0, %s90
    %s107 = sphi 0, %s91
  $region4: #{conv_block_forward.5} parent=0 // loop_header_branch
    %12 = sbr.rel (%p10) target = $region8
  $region5: #{conv_block_forward.5} parent=0 // loop_body
    %s14 = ssub.s32 %s9, 1
    %s15 = ssub.s32 %s9, 2
    %s16 = sadd.s32 %s9, 1
    %s17 = ssub.s32 %s9, %s16
    %p18 = scmp.eq.s32.totalorder %s17, 0
    %s20 = sadd.s32 %s19, 1
    %s21 = scalar_select %p18, %s19, %s20
    %p24 = pneg %p18
    %p25 = scmp.eq.s32.totalorder %s9, 1
    %p26 = por %p24, %p25
    %p27 = scmp.ne.s32.totalorder %s19, %s22
    %p28 = scmp.eq.s32.totalorder %s9, 0
    %p29 = por %p27, %p28
    %p30 = scmp.ne.s32.totalorder %s19, %s22
    %p31 = scmp.eq.s32.totalorder %s14, 1
    %p32 = por %p30, %p31
    %p33 = scmp.ne.s32.totalorder %s22, %s23
    %p34 = scmp.eq.s32.totalorder %s14, 0
    %p35 = por %p33, %p34
    %p36 = scmp.ne.s32.totalorder %s22, %s23
    %p37 = scmp.eq.s32.totalorder %s15, 1
    %p38 = por %p36, %p37
    %p40 = scmp.ne.s32.totalorder %s23, %s39
    %p41 = scmp.eq.s32.totalorder %s15, 0
    %p42 = por %p40, %p41
    %s44 = sadd.s32 %s43, 1
    %p47 = scmp.eq.s32.totalorder %s9, 1
    %p48 = scmp.ne.s32.totalorder %s43, %s45
    %p49 = scmp.eq.s32.totalorder %s9, 0
    %p50 = por %p48, %p49
    %p51 = scmp.ne.s32.totalorder %s43, %s45
    %p52 = scmp.eq.s32.totalorder %s14, 1
    %p53 = por %p51, %p52
    %p54 = scmp.ne.s32.totalorder %s45, %s46
    %p55 = scmp.eq.s32.totalorder %s14, 0
    %p56 = por %p54, %p55
    %p57 = scmp.ne.s32.totalorder %s45, %s46
    %p58 = scmp.eq.s32.totalorder %s15, 1
    %p59 = por %p57, %p58
    %p61 = scmp.ne.s32.totalorder %s46, %s60
    %p62 = scmp.eq.s32.totalorder %s15, 0
    %p63 = por %p61, %p62
    %s65 = sadd.s32 %s64, 1
    %p68 = scmp.eq.s32.totalorder %s9, 1
    %p69 = scmp.ne.s32.totalorder %s64, %s66
    %p70 = scmp.eq.s32.totalorder %s9, 0
    %p71 = por %p69, %p70
    %p72 = scmp.ne.s32.totalorder %s64, %s66
    %p73 = scmp.eq.s32.totalorder %s14, 1
    %p74 = por %p72, %p73
    %p75 = scmp.ne.s32.totalorder %s66, %s67
    %p76 = scmp.eq.s32.totalorder %s14, 0
    %p77 = por %p75, %p76
    %p78 = scmp.ne.s32.totalorder %s66, %s67
    %p79 = scmp.eq.s32.totalorder %s15, 1
    %p80 = por %p78, %p79
    %p82 = scmp.ne.s32.totalorder %s67, %s81
    %p83 = scmp.eq.s32.totalorder %s15, 0
    %p84 = por %p82, %p83
    %s85 = ssub.s32 %s9, %s16
    %p86 = scmp.eq.s32.totalorder %s85, 0
    %s88 = sadd.s32 %s87, 1
    %s89 = scalar_select %p86, %s87, %s88
    %p92 = pneg %p86
    %p93 = scmp.eq.s32.totalorder %s9, 1
    %p94 = por %p92, %p93
    %p95 = scmp.ne.s32.totalorder %s87, %s90
    %p96 = scmp.eq.s32.totalorder %s9, 0
    %p97 = por %p95, %p96
    %p98 = scmp.ne.s32.totalorder %s87, %s90
    %p99 = scmp.eq.s32.totalorder %s14, 1
    %p100 = por %p98, %p99
    %p101 = scmp.ne.s32.totalorder %s90, %s91
    %p102 = scmp.eq.s32.totalorder %s14, 0
    %p103 = por %p101, %p102
    %p104 = scmp.ne.s32.totalorder %s90, %s91
    %p105 = scmp.eq.s32.totalorder %s15, 1
    %p106 = por %p104, %p105
    %p108 = scmp.ne.s32.totalorder %s91, %s107
    %p109 = scmp.eq.s32.totalorder %s15, 0
    %p110 = por %p108, %p109
    %p111 = scmp.le.s32.totalorder 1, %s9
    %p112 = scmp.lt.s32.totalorder %s9, 3
    %p113 = pnand %p111, %p112
    %p114 = pneg %p113
    // Predicated region
    $region9: #{conv_block_forward.5} parent=5 // pred_check
      _
    $region10: #{conv_block_forward.5} parent=5 // pred_check_branch
      %116 = sbr.rel (%p113) target = $region12
    $region11: #{conv_block_forward.5} parent=5 // pred_region
      %s117 = ssub.s32 %s9, 1
      // Predicated region
      $region13: #{conv_block_forward.5} parent=11 // pred_check
        %p118 = pneg %p56
      $region14: #{conv_block_forward.5} parent=11 // pred_check_branch
        %120 = sbr.rel (%p118) target = $region16
      $region15: #{conv_block_forward.5} parent=11 // pred_region
        _
      $region16: #{conv_block_forward.5} parent=11 // pred_fallthru
        _
      // Predicated region
      $region17: #{conv_block_forward.5} parent=11 // pred_check
        %p121 = pneg %p77
      $region18: #{conv_block_forward.5} parent=11 // pred_check_branch
        %123 = sbr.rel (%p121) target = $region20
      $region19: #{conv_block_forward.5} parent=11 // pred_region
        _
      $region20: #{conv_block_forward.5} parent=11 // pred_fallthru
        _
    $region12: #{conv_block_forward.5} parent=5 // pred_fallthru
      _
    %p124 = scmp.lt.s32.totalorder %s9, 2
    // Predicated region
    $region21: #{conv_block_forward.5} parent=5 // pred_check
      %p125 = pneg %p124
    $region22: #{conv_block_forward.5} parent=5 // pred_check_branch
      %127 = sbr.rel (%p125) target = $region24
    $region23: #{conv_block_forward.5} parent=5 // pred_region
      // Predicated region
      $region25: #{conv_block_forward.5} parent=23 // pred_check
        %p128 = pneg %p29
      $region26: #{conv_block_forward.5} parent=23 // pred_check_branch
        %130 = sbr.rel (%p128) target = $region28
      $region27: #{conv_block_forward.5} parent=23 // pred_region
        %s131 = smul.u32 6, %s9
        %p132 = scmp.lt.s32.totalorder %s131, 11
        %s133 = scalar_select %p132, %s131, 11
        %s134 = smul.addr %s133, 8
        %s135 = scalar_lea.vmem %s0, %s134
        %s136 = smul.u32 6, %s9
      $region28: #{conv_block_forward.5} parent=23 // pred_fallthru
        _
    $region24: #{conv_block_forward.5} parent=5 // pred_fallthru
      _
    %p137 = scmp.le.s32.totalorder 1, %s9
    %p138 = scmp.lt.s32.totalorder %s9, 3
    %p139 = pnand %p137, %p138
    %p140 = pneg %p139
    // Predicated region
    $region29: #{conv_block_forward.5} parent=5 // pred_check
      _
    $region30: #{conv_block_forward.5} parent=5 // pred_check_branch
      %142 = sbr.rel (%p139) target = $region32
    $region31: #{conv_block_forward.5} parent=5 // pred_region
      %s143 = ssub.s32 %s9, 1
      %s144 = smul.u32 6, %s14
      %p145 = scmp.lt.s32.totalorder %s144, 11
      %s146 = scalar_select %p145, %s144, 11
      %s147 = smul.addr %s146, 8
      %s148 = scalar_lea.vmem %s0, %s147
      %p149 = pneg %p35
      %p150 = pneg %p32
      %p151 = pneg %p56
      %p152 = pneg %p53
      %p153 = pneg %p77
      %p154 = pneg %p74
      %p155 = pneg %p103
      %p156 = pneg %p100
      %s157 = smul.u32 6, %s14
      %p158 = scmp.lt.s32.totalorder %s157, 11
      %s159 = scalar_select %p158, %s157, 11
      %s160 = smul.addr %s159, 8
      %s161 = scalar_lea.vmem %s3, %s160
      %s162 = smul.u32 6, %s14
      %p163 = scmp.lt.s32.totalorder %s162, 11
      %s164 = scalar_select %p163, %s162, 11
      %s165 = smul.addr %s164, 8
      %s166 = scalar_lea.vmem %s0, %s165
      %s167 = smul.u32 6, %s14
      %s168 = smul.u32 6, %s14
      %p169 = scmp.lt.s32.totalorder %s168, 11
      %s170 = scalar_select %p169, %s168, 11
      %s171 = smul.addr %s170, 8
      %s172 = scalar_lea.vmem %s3, %s171
      %s173 = smul.u32 6, %s14
      %v174 = vld [vmem:[%s166] sm:$0xff]
      %v175 = vld [vmem:[%s166 + $0x8] sm:$0xff]
      %v176 = vld [vmem:[%s166 + $0x10] sm:$0xff]
      %v177 = vld [vmem:[%s166 + $0x18] sm:$0xff]
      %v178 = vld [vmem:[%s166 + $0x20] sm:$0xff]
      %v179 = vld [vmem:[%s166 + $0x28] sm:$0xff]
      %v180 = vld [vmem:[%s1] sm:$0x1]
      %v182 = vlaneseq
      %v183 = vshrl.u32 %v182, 7
      %v184 = vsub.s32 0, %v183
      %v185 = vrot.slane %v180, %v184
      %v187 = vmul.f32 %v174, %v185
      %v188 = vmul.f32 %v175, %v185
      %v189 = vmul.f32 %v176, %v185
      %v190 = vmul.f32 %v177, %v185
      %v191 = vmul.f32 %v178, %v185
      %v192 = vmul.f32 %v179, %v185
      %v193 = vld [vmem:[%s2] sm:$0x1]
      %v195 = vlaneseq
      %v196 = vshrl.u32 %v195, 7
      %v197 = vsub.s32 0, %v196
      %v198 = vrot.slane %v193, %v197
      %v200 = vadd.f32 %v187, %v198
      %v201 = vadd.f32 %v188, %v198
      %v202 = vadd.f32 %v189, %v198
      %v203 = vadd.f32 %v190, %v198
      %v204 = vadd.f32 %v191, %v198
      %v205 = vadd.f32 %v192, %v198
      %v206 = vmax.f32 %v200, 0.0
      %v207 = vmax.f32 %v201, 0.0
      %v208 = vmax.f32 %v202, 0.0
      %v209 = vmax.f32 %v203, 0.0
      %v210 = vmax.f32 %v204, 0.0
      %v211 = vmax.f32 %v205, 0.0
      %212 = vst [vmem:[%s172] sm:$0xff] %v206
      %213 = vst [vmem:[%s172 + $0x8] sm:$0xff] %v207
      %214 = vst [vmem:[%s172 + $0x10] sm:$0xff] %v208
      %215 = vst [vmem:[%s172 + $0x18] sm:$0xff] %v209
      %216 = vst [vmem:[%s172 + $0x20] sm:$0xff] %v210
      %217 = vst [vmem:[%s172 + $0x28] sm:$0xff] %v211
      %s218 = smul.u32 6, %s14
      %p219 = scmp.lt.s32.totalorder %s218, 11
      %s220 = scalar_select %p219, %s218, 11
      %s221 = smul.addr %s220, 8
      %s222 = scalar_lea.vmem %s3, %s221
      // Predicated region
      $region33: #{conv_block_forward.5} parent=31 // pred_check
        %p223 = pneg %p100
      $region34: #{conv_block_forward.5} parent=31 // pred_check_branch
        %225 = sbr.rel (%p223) target = $region36
      $region35: #{conv_block_forward.5} parent=31 // pred_region
        %s226 = smul.u32 6, %s14
      $region36: #{conv_block_forward.5} parent=31 // pred_fallthru
        _
    $region32: #{conv_block_forward.5} parent=5 // pred_fallthru
      _
    %p227 = scmp.le.s32.totalorder 2, %s9
    // Predicated region
    $region37: #{conv_block_forward.5} parent=5 // pred_check
      %p228 = pneg %p227
    $region38: #{conv_block_forward.5} parent=5 // pred_check_branch
      %230 = sbr.rel (%p228) target = $region40
    $region39: #{conv_block_forward.5} parent=5 // pred_region
      %s231 = ssub.s32 %s9, 2
      // Predicated region
      $region41: #{conv_block_forward.5} parent=39 // pred_check
        %p232 = pneg %p106
      $region42: #{conv_block_forward.5} parent=39 // pred_check_branch
        %234 = sbr.rel (%p232) target = $region44
      $region43: #{conv_block_forward.5} parent=39 // pred_region
        %s235 = smul.u32 6, %s15
        %p236 = scmp.lt.s32.totalorder %s235, 11
        %s237 = scalar_select %p236, %s235, 11
        %s238 = smul.addr %s237, 8
        %s239 = scalar_lea.vmem %s3, %s238
      $region44: #{conv_block_forward.5} parent=39 // pred_fallthru
        _
    $region40: #{conv_block_forward.5} parent=5 // pred_fallthru
      _
  $region6: #{conv_block_forward.5} parent=0 // loop_footer
    %s13 = sadd.s32 1, %s9
  $region7: #{conv_block_forward.5} parent=0 // loop_footer_branch
    %8 = sbr.rel target = $region3
  $region8: #{conv_block_forward.5} parent=0 // loop_exit
    _

// kernel: conv_block_forward.4
$region0: #{conv_block_forward.4}
  #allocation0 [shape = 'u32[]', space=smem, size = 0x4, offset = 0x4, fixed_abs, tag = 'smem constant byte address 0x4 - core index']
  #allocation1 [shape = 'u32[144,128]{1,0:T(1,128)}', space=vmem, size = 0x12000, scoped, tag = 'internal scratch']
  %s0 = inlined_call_operand.vmem [shape: f32[96,128], index: 0, kind: input, shape index: {}]
  %s1 = inlined_call_operand.vmem [shape: f32[1,128], index: 1, kind: input, shape index: {}]
  %s2 = inlined_call_operand.vmem [shape: f32[1,128], index: 2, kind: input, shape index: {}]
  %s3 = inlined_call_operand.vmem [shape: f32[3,128,128], index: 3, kind: input, shape index: {}]
  %s4 = inlined_call_operand.vmem [shape: f32[1,128], index: 4, kind: input, shape index: {}]
  %s5 = inlined_call_operand.vmem [shape: f32[96,128], index: 5, kind: output, shape index: {0}]
  %s6 = inlined_call_operand.vmem [shape: f32[2,2,128], index: 6, kind: output, shape index: {1}]
  %7 = xla_tuple %s5, %s6
  %s8 = sld [smem:[#allocation0]]
  $region61: #{conv_block_forward.4} parent=0
    _
  %s10 = ssub.s32 1, %s8
  %s11 = scalar_select 0, %s10, %s8
  loop: start=0, step=1, limit=4
  $region2: #{conv_block_forward.4} parent=0 // loop_pre_header
    _
  $region3: #{conv_block_forward.4} parent=0 // loop_header
    %s13 = sphi 0, %s17
    %p14 = scmp.ge.s32.totalorder %s13, 4
    %s23 = sphi 0, %s25
    %s26 = sphi 0, %s23
    %s27 = sphi 0, %s26
    %s43 = sphi 0, %s27
    %s47 = sphi 0, %s47
    %s49 = sphi 0, %s47
    %s50 = sphi 0, %s49
    %s64 = sphi 0, %s50
    %s68 = sphi 0, %s68
    %s70 = sphi 0, %s68
    %s71 = sphi 0, %s70
    %s85 = sphi 0, %s71
    %s89 = sphi 0, %s89
    %s91 = sphi 0, %s89
    %s92 = sphi 0, %s91
    %s106 = sphi 0, %s92
    %s110 = sphi 0, %s110
    %s112 = sphi 0, %s110
    %s113 = sphi 0, %s112
    %s127 = sphi 0, %s113
    %s133 = sphi 0, %s135
    %s136 = sphi 0, %s133
    %s137 = sphi 0, %s136
    %s153 = sphi 0, %s137
    %s159 = sphi 0, %s161
    %s162 = sphi 0, %s159
    %s163 = sphi 0, %s162
    %s179 = sphi 0, %s163
  $region4: #{conv_block_forward.4} parent=0 // loop_header_branch
    %16 = sbr.rel (%p14) target = $region8
  $region5: #{conv_block_forward.4} parent=0 // loop_body
    %s18 = ssub.s32 %s13, 1
    %s19 = ssub.s32 %s13, 2
    %s20 = sadd.s32 %s13, 1
    %s21 = ssub.s32 %s13, %s20
    %p22 = scmp.eq.s32.totalorder %s21, 0
    %s24 = sadd.s32 %s23, 1
    %s25 = scalar_select %p22, %s23, %s24
    %p28 = pneg %p22
    %p29 = scmp.eq.s32.totalorder %s13, 1
    %p30 = por %p28, %p29
    %p31 = scmp.ne.s32.totalorder %s23, %s26
    %p32 = scmp.eq.s32.totalorder %s13, 0
    %p33 = por %p31, %p32
    %p34 = scmp.ne.s32.totalorder %s23, %s26
    %p35 = scmp.eq.s32.totalorder %s18, 1
    %p36 = por %p34, %p35
    %p37 = scmp.ne.s32.totalorder %s26, %s27
    %p38 = scmp.eq.s32.totalorder %s18, 0
    %p39 = por %p37, %p38
    %p40 = scmp.ne.s32.totalorder %s26, %s27
    %p41 = scmp.eq.s32.totalorder %s19, 1
    %p42 = por %p40, %p41
    %p44 = scmp.ne.s32.totalorder %s27, %s43
    %p45 = scmp.eq.s32.totalorder %s19, 0
    %p46 = por %p44, %p45
    %s48 = sadd.s32 %s47, 1
    %p51 = scmp.eq.s32.totalorder %s13, 1
    %p52 = scmp.ne.s32.totalorder %s47, %s49
    %p53 = scmp.eq.s32.totalorder %s13, 0
    %p54 = por %p52, %p53
    %p55 = scmp.ne.s32.totalorder %s47, %s49
    %p56 = scmp.eq.s32.totalorder %s18, 1
    %p57 = por %p55, %p56
    %p58 = scmp.ne.s32.totalorder %s49, %s50
    %p59 = scmp.eq.s32.totalorder %s18, 0
    %p60 = por %p58, %p59
    %p61 = scmp.ne.s32.totalorder %s49, %s50
    %p62 = scmp.eq.s32.totalorder %s19, 1
    %p63 = por %p61, %p62
    %p65 = scmp.ne.s32.totalorder %s50, %s64
    %p66 = scmp.eq.s32.totalorder %s19, 0
    %p67 = por %p65, %p66
    %s69 = sadd.s32 %s68, 1
    %p72 = scmp.eq.s32.totalorder %s13, 1
    %p73 = scmp.ne.s32.totalorder %s68, %s70
    %p74 = scmp.eq.s32.totalorder %s13, 0
    %p75 = por %p73, %p74
    %p76 = scmp.ne.s32.totalorder %s68, %s70
    %p77 = scmp.eq.s32.totalorder %s18, 1
    %p78 = por %p76, %p77
    %p79 = scmp.ne.s32.totalorder %s70, %s71
    %p80 = scmp.eq.s32.totalorder %s18, 0
    %p81 = por %p79, %p80
    %p82 = scmp.ne.s32.totalorder %s70, %s71
    %p83 = scmp.eq.s32.totalorder %s19, 1
    %p84 = por %p82, %p83
    %p86 = scmp.ne.s32.totalorder %s71, %s85
    %p87 = scmp.eq.s32.totalorder %s19, 0
    %p88 = por %p86, %p87
    %s90 = sadd.s32 %s89, 1
    %p93 = scmp.eq.s32.totalorder %s13, 1
    %p94 = scmp.ne.s32.totalorder %s89, %s91
    %p95 = scmp.eq.s32.totalorder %s13, 0
    %p96 = por %p94, %p95
    %p97 = scmp.ne.s32.totalorder %s89, %s91
    %p98 = scmp.eq.s32.totalorder %s18, 1
    %p99 = por %p97, %p98
    %p100 = scmp.ne.s32.totalorder %s91, %s92
    %p101 = scmp.eq.s32.totalorder %s18, 0
    %p102 = por %p100, %p101
    %p103 = scmp.ne.s32.totalorder %s91, %s92
    %p104 = scmp.eq.s32.totalorder %s19, 1
    %p105 = por %p103, %p104
    %p107 = scmp.ne.s32.totalorder %s92, %s106
    %p108 = scmp.eq.s32.totalorder %s19, 0
    %p109 = por %p107, %p108
    %s111 = sadd.s32 %s110, 1
    %p114 = scmp.eq.s32.totalorder %s13, 1
    %p115 = scmp.ne.s32.totalorder %s110, %s112
    %p116 = scmp.eq.s32.totalorder %s13, 0
    %p117 = por %p115, %p116
    %p118 = scmp.ne.s32.totalorder %s110, %s112
    %p119 = scmp.eq.s32.totalorder %s18, 1
    %p120 = por %p118, %p119
    %p121 = scmp.ne.s32.totalorder %s112, %s113
    %p122 = scmp.eq.s32.totalorder %s18, 0
    %p123 = por %p121, %p122
    %p124 = scmp.ne.s32.totalorder %s112, %s113
    %p125 = scmp.eq.s32.totalorder %s19, 1
    %p126 = por %p124, %p125
    %p128 = scmp.ne.s32.totalorder %s113, %s127
    %p129 = scmp.eq.s32.totalorder %s19, 0
    %p130 = por %p128, %p129
    %s131 = ssub.s32 %s13, %s20
    %p132 = scmp.eq.s32.totalorder %s131, 0
    %s134 = sadd.s32 %s133, 1
    %s135 = scalar_select %p132, %s133, %s134
    %p138 = pneg %p132
    %p139 = scmp.eq.s32.totalorder %s13, 1
    %p140 = por %p138, %p139
    %p141 = scmp.ne.s32.totalorder %s133, %s136
    %p142 = scmp.eq.s32.totalorder %s13, 0
    %p143 = por %p141, %p142
    %p144 = scmp.ne.s32.totalorder %s133, %s136
    %p145 = scmp.eq.s32.totalorder %s18, 1
    %p146 = por %p144, %p145
    %p147 = scmp.ne.s32.totalorder %s136, %s137
    %p148 = scmp.eq.s32.totalorder %s18, 0
    %p149 = por %p147, %p148
    %p150 = scmp.ne.s32.totalorder %s136, %s137
    %p151 = scmp.eq.s32.totalorder %s19, 1
    %p152 = por %p150, %p151
    %p154 = scmp.ne.s32.totalorder %s137, %s153
    %p155 = scmp.eq.s32.totalorder %s19, 0
    %p156 = por %p154, %p155
    %s157 = ssub.s32 %s13, %s20
    %p158 = scmp.eq.s32.totalorder %s157, 0
    %s160 = sadd.s32 %s159, 1
    %s161 = scalar_select %p158, %s159, %s160
    %p164 = pneg %p158
    %p165 = scmp.eq.s32.totalorder %s13, 1
    %p166 = por %p164, %p165
    %p167 = scmp.ne.s32.totalorder %s159, %s162
    %p168 = scmp.eq.s32.totalorder %s13, 0
    %p169 = por %p167, %p168
    %p170 = scmp.ne.s32.totalorder %s159, %s162
    %p171 = scmp.eq.s32.totalorder %s18, 1
    %p172 = por %p170, %p171
    %p173 = scmp.ne.s32.totalorder %s162, %s163
    %p174 = scmp.eq.s32.totalorder %s18, 0
    %p175 = por %p173, %p174
    %p176 = scmp.ne.s32.totalorder %s162, %s163
    %p177 = scmp.eq.s32.totalorder %s19, 1
    %p178 = por %p176, %p177
    %p180 = scmp.ne.s32.totalorder %s163, %s179
    %p181 = scmp.eq.s32.totalorder %s19, 0
    %p182 = por %p180, %p181
    %p183 = scmp.le.s32.totalorder 1, %s13
    %p184 = scmp.lt.s32.totalorder %s13, 3
    %p185 = pnand %p183, %p184
    %p186 = pneg %p185
    // Predicated region
    $region9: #{conv_block_forward.4} parent=5 // pred_check
      _
    $region10: #{conv_block_forward.4} parent=5 // pred_check_branch
      %188 = sbr.rel (%p185) target = $region12
    $region11: #{conv_block_forward.4} parent=5 // pred_region
      %s189 = ssub.s32 %s13, 1
      // Predicated region
      $region13: #{conv_block_forward.4} parent=11 // pred_check
        %p190 = pneg %p60
      $region14: #{conv_block_forward.4} parent=11 // pred_check_branch
        %192 = sbr.rel (%p190) target = $region16
      $region15: #{conv_block_forward.4} parent=11 // pred_region
        _
      $region16: #{conv_block_forward.4} parent=11 // pred_fallthru
        _
      // Predicated region
      $region17: #{conv_block_forward.4} parent=11 // pred_check
        %p193 = pneg %p81
      $region18: #{conv_block_forward.4} parent=11 // pred_check_branch
        %195 = sbr.rel (%p193) target = $region20
      $region19: #{conv_block_forward.4} parent=11 // pred_region
        _
      $region20: #{conv_block_forward.4} parent=11 // pred_fallthru
        _
      // Predicated region
      $region21: #{conv_block_forward.4} parent=11 // pred_check
        %p196 = pneg %p102
      $region22: #{conv_block_forward.4} parent=11 // pred_check_branch
        %198 = sbr.rel (%p196) target = $region24
      $region23: #{conv_block_forward.4} parent=11 // pred_region
        _
      $region24: #{conv_block_forward.4} parent=11 // pred_fallthru
        _
      // Predicated region
      $region25: #{conv_block_forward.4} parent=11 // pred_check
        %p199 = pneg %p123
      $region26: #{conv_block_forward.4} parent=11 // pred_check_branch
        %201 = sbr.rel (%p199) target = $region28
      $region27: #{conv_block_forward.4} parent=11 // pred_region
        _
      $region28: #{conv_block_forward.4} parent=11 // pred_fallthru
        _
    $region12: #{conv_block_forward.4} parent=5 // pred_fallthru
      _
    %p202 = scmp.lt.s32.totalorder %s13, 2
    // Predicated region
    $region29: #{conv_block_forward.4} parent=5 // pred_check
      %p203 = pneg %p202
    $region30: #{conv_block_forward.4} parent=5 // pred_check_branch
      %205 = sbr.rel (%p203) target = $region32
    $region31: #{conv_block_forward.4} parent=5 // pred_region
      // Predicated region
      $region33: #{conv_block_forward.4} parent=31 // pred_check
        %p206 = pneg %p33
      $region34: #{conv_block_forward.4} parent=31 // pred_check_branch
        %208 = sbr.rel (%p206) target = $region36
      $region35: #{conv_block_forward.4} parent=31 // pred_region
        %s209 = smul.u32 6, %s13
        %p210 = scmp.lt.s32.totalorder %s209, 11
        %s211 = scalar_select %p210, %s209, 11
        %s212 = smul.addr %s211, 8
        %s213 = scalar_lea.vmem %s0, %s212
        %s214 = smul.u32 6, %s13
      $region36: #{conv_block_forward.4} parent=31 // pred_fallthru
        _
    $region32: #{conv_block_forward.4} parent=5 // pred_fallthru
      _
    %p215 = scmp.le.s32.totalorder 1, %s13
    %p216 = scmp.lt.s32.totalorder %s13, 3
    %p217 = pnand %p215, %p216
    %p218 = pneg %p217
    // Predicated region
    $region37: #{conv_block_forward.4} parent=5 // pred_check
      _
    $region38: #{conv_block_forward.4} parent=5 // pred_check_branch
      %220 = sbr.rel (%p217) target = $region40
    $region39: #{conv_block_forward.4} parent=5 // pred_region
      %s221 = ssub.s32 %s13, 1
      %s222 = smul.u32 6, %s18
      %p223 = scmp.lt.s32.totalorder %s222, 11
      %s224 = scalar_select %p223, %s222, 11
      %s225 = smul.addr %s224, 8
      %s226 = scalar_lea.vmem %s0, %s225
      %p227 = pneg %p39
      %p228 = pneg %p36
      %p229 = pneg %p60
      %p230 = pneg %p57
      %p231 = pneg %p81
      %p232 = pneg %p78
      %p233 = pneg %p102
      %p234 = pneg %p99
      %p235 = pneg %p123
      %p236 = pneg %p120
      %p237 = pneg %p149
      %p238 = pneg %p146
      %s239 = smul.u32 6, %s18
      %p240 = scmp.lt.s32.totalorder %s239, 11
      %s241 = scalar_select %p240, %s239, 11
      %s242 = smul.addr %s241, 8
      %s243 = scalar_lea.vmem %s5, %s242
      %p244 = pneg %p175
      %p245 = pneg %p172
      %p246 = scmp.lt.s32.totalorder %s18, 1
      %s247 = scalar_select %p246, %s18, 1
      %s248 = smul.addr %s247, 2
      %s249 = scalar_lea.vmem %s6, %s248
      %s250 = smul.u32 6, %s18
      %p251 = scmp.lt.s32.totalorder %s250, 11
      %s252 = scalar_select %p251, %s250, 11
      %s253 = smul.addr %s252, 8
      %s254 = scalar_lea.vmem %s0, %s253
      %s255 = smul.u32 6, %s18
      %s256 = smul.u32 6, %s18
      %p257 = scmp.lt.s32.totalorder %s256, 11
      %s258 = scalar_select %p257, %s256, 11
      %s259 = smul.addr %s258, 8
      %s260 = scalar_lea.vmem %s5, %s259
      %s261 = smul.u32 6, %s18
      %p262 = scmp.lt.s32.totalorder %s18, 1
      %s263 = scalar_select %p262, %s18, 1
      %s264 = smul.addr %s263, 2
      %s265 = scalar_lea.vmem %s6, %s264
      %v266 = vlaneseq
      %v267 = vshrl.u32 %v266, 7
      %v268 = vadd.s32 %v267, 8
      %v269 = vadd.s32 %v267, 16
      %v270 = vadd.s32 %v267, 24
      %v271 = vadd.s32 %v267, 32
      %v272 = vadd.s32 %v267, 40
      %vm273 = vcmp.lt.s32.totalorder %v267, 0
      %v274 = vsub.s32 0, %v267
      %v275 = vsel %vm273, %v274, %v267
      %v276 = vmul.u32.u64.compose %v275, 2863311531
      %v277 = vextract.low.u32 %v276
      %v278 = vextract.high.u32 %v276
      %v279 = vshrl.u32 %v278, 4
      %v280 = vmul.u32 %v279, 24
      %v281 = vsub.s32 %v275, %v280
      %v282 = vsub.s32 0, %v281
      %v283 = vsel %vm273, %v282, %v281
      %vm284 = vcmp.lt.s32.totalorder %v268, 0
      %v285 = vsub.s32 0, %v268
      %v286 = vsel %vm284, %v285, %v268
      %v287 = vmul.u32.u64.compose %v286, 2863311531
      %v288 = vextract.low.u32 %v287
      %v289 = vextract.high.u32 %v287
      %v290 = vshrl.u32 %v289, 4
      %v291 = vmul.u32 %v290, 24
      %v292 = vsub.s32 %v286, %v291
      %v293 = vsub.s32 0, %v292
      %v294 = vsel %vm284, %v293, %v292
      %vm295 = vcmp.lt.s32.totalorder %v269, 0
      %v296 = vsub.s32 0, %v269
      %v297 = vsel %vm295, %v296, %v269
      %v298 = vmul.u32.u64.compose %v297, 2863311531
      %v299 = vextract.low.u32 %v298
      %v300 = vextract.high.u32 %v298
      %v301 = vshrl.u32 %v300, 4
      %v302 = vmul.u32 %v301, 24
      %v303 = vsub.s32 %v297, %v302
      %v304 = vsub.s32 0, %v303
      %v305 = vsel %vm295, %v304, %v303
      %vm306 = vcmp.lt.s32.totalorder %v270, 0
      %v307 = vsub.s32 0, %v270
      %v308 = vsel %vm306, %v307, %v270
      %v309 = vmul.u32.u64.compose %v308, 2863311531
      %v310 = vextract.low.u32 %v309
      %v311 = vextract.high.u32 %v309
      %v312 = vshrl.u32 %v311, 4
      %v313 = vmul.u32 %v312, 24
      %v314 = vsub.s32 %v308, %v313
      %v315 = vsub.s32 0, %v314
      %v316 = vsel %vm306, %v315, %v314
      %vm317 = vcmp.lt.s32.totalorder %v271, 0
      %v318 = vsub.s32 0, %v271
      %v319 = vsel %vm317, %v318, %v271
      %v320 = vmul.u32.u64.compose %v319, 2863311531
      %v321 = vextract.low.u32 %v320
      %v322 = vextract.high.u32 %v320
      %v323 = vshrl.u32 %v322, 4
      %v324 = vmul.u32 %v323, 24
      %v325 = vsub.s32 %v319, %v324
      %v326 = vsub.s32 0, %v325
      %v327 = vsel %vm317, %v326, %v325
      %vm328 = vcmp.lt.s32.totalorder %v272, 0
      %v329 = vsub.s32 0, %v272
      %v330 = vsel %vm328, %v329, %v272
      %v331 = vmul.u32.u64.compose %v330, 2863311531
      %v332 = vextract.low.u32 %v331
      %v333 = vextract.high.u32 %v331
      %v334 = vshrl.u32 %v333, 4
      %v335 = vmul.u32 %v334, 24
      %v336 = vsub.s32 %v330, %v335
      %v337 = vsub.s32 0, %v336
      %v338 = vsel %vm328, %v337, %v336
      %vm339 = vcmp.ne.s32.totalorder %v283, 0
      %vm340 = vcmp.ne.s32.totalorder %v294, 0
      %vm341 = vcmp.ne.s32.totalorder %v305, 0
      %vm342 = vcmp.ne.s32.totalorder %v316, 0
      %vm343 = vcmp.ne.s32.totalorder %v327, 0
      %vm344 = vcmp.ne.s32.totalorder %v338, 0
      %vm345 = vcmp.lt.s32.totalorder %v283, 0
      %vm346 = vcmp.lt.s32.totalorder %v294, 0
      %vm347 = vcmp.lt.s32.totalorder %v305, 0
      %vm348 = vcmp.lt.s32.totalorder %v316, 0
      %vm349 = vcmp.lt.s32.totalorder %v327, 0
      %vm350 = vcmp.lt.s32.totalorder %v338, 0
      %vm351 = vmand %vm345, %vm339
      %vm352 = vmand %vm346, %vm340
      %vm353 = vmand %vm347, %vm341
      %vm354 = vmand %vm348, %vm342
      %vm355 = vmand %vm349, %vm343
      %vm356 = vmand %vm350, %vm344
      %v357 = vadd.s32 %v283, 24
      %v358 = vadd.s32 %v294, 24
      %v359 = vadd.s32 %v305, 24
      %v360 = vadd.s32 %v316, 24
      %v361 = vadd.s32 %v327, 24
      %v362 = vadd.s32 %v338, 24
      %v363 = vsel %vm351, %v357, %v283
      %v364 = vsel %vm352, %v358, %v294
      %v365 = vsel %vm353, %v359, %v305
      %v366 = vsel %vm354, %v360, %v316
      %v367 = vsel %vm355, %v361, %v327
      %v368 = vsel %vm356, %v362, %v338
      %vm369 = vcmp.ge.s32.totalorder %v363, 1
      %vm370 = vcmp.ge.s32.totalorder %v364, 1
      %vm371 = vcmp.ge.s32.totalorder %v365, 1
      %vm372 = vcmp.ge.s32.totalorder %v366, 1
      %vm373 = vcmp.ge.s32.totalorder %v367, 1
      %vm374 = vcmp.ge.s32.totalorder %v368, 1
      %vm375 = vcmp.le.s32.totalorder %v363, 16
      %vm376 = vcmp.le.s32.totalorder %v364, 16
      %vm377 = vcmp.le.s32.totalorder %v365, 16
      %vm378 = vcmp.le.s32.totalorder %v366, 16
      %vm379 = vcmp.le.s32.totalorder %v367, 16
      %vm380 = vcmp.le.s32.totalorder %v368, 16
      %vm381 = vmand %vm369, %vm375
      %vm382 = vmand %vm370, %vm376
      %vm383 = vmand %vm371, %vm377
      %vm384 = vmand %vm372, %vm378
      %vm385 = vmand %vm373, %vm379
      %vm386 = vmand %vm374, %vm380
      %v387 = vld [vmem:[%s254] sm:$0xff]
      %v388 = vld [vmem:[%s254 + $0x8] sm:$0xff]
      %v389 = vld [vmem:[%s254 + $0x10] sm:$0xff]
      %v390 = vld [vmem:[%s254 + $0x18] sm:$0xff]
      %v391 = vld [vmem:[%s254 + $0x20] sm:$0xff]
      %v392 = vld [vmem:[%s254 + $0x28] sm:$0xff]
      %v393 = vld [vmem:[%s1] sm:$0x1]
      %v395 = vlaneseq
      %v396 = vshrl.u32 %v395, 7
      %v397 = vsub.s32 0, %v396
      %v398 = vrot.slane %v393, %v397
      %v400 = vmul.f32 %v387, %v398
      %v401 = vmul.f32 %v388, %v398
      %v402 = vmul.f32 %v389, %v398
      %v403 = vmul.f32 %v390, %v398
      %v404 = vmul.f32 %v391, %v398
      %v405 = vmul.f32 %v392, %v398
      %v406 = vld [vmem:[%s2] sm:$0x1]
      %v408 = vlaneseq
      %v409 = vshrl.u32 %v408, 7
      %v410 = vsub.s32 0, %v409
      %v411 = vrot.slane %v406, %v410
      %v413 = vadd.f32 %v400, %v411
      %v414 = vadd.f32 %v401, %v411
      %v415 = vadd.f32 %v402, %v411
      %v416 = vadd.f32 %v403, %v411
      %v417 = vadd.f32 %v404, %v411
      %v418 = vadd.f32 %v405, %v411
      %v419 = vmax.f32 %v413, 0.0
      %v420 = vmax.f32 %v414, 0.0
      %v421 = vmax.f32 %v415, 0.0
      %v422 = vmax.f32 %v416, 0.0
      %v423 = vmax.f32 %v417, 0.0
      %v424 = vmax.f32 %v418, 0.0
      %v425 = vsel %vm381, 1, 0
      %v426 = vsel %vm382, 1, 0
      %v427 = vsel %vm383, 1, 0
      %v428 = vsel %vm384, 1, 0
      %v429 = vsel %vm385, 1, 0
      %v430 = vsel %vm386, 1, 0
      %vm431 = vcmp.eq.s32.totalorder %v425, 1
      %vm432 = vcmp.eq.s32.totalorder %v426, 1
      %vm433 = vcmp.eq.s32.totalorder %v427, 1
      %vm434 = vcmp.eq.s32.totalorder %v428, 1
      %vm435 = vcmp.eq.s32.totalorder %v429, 1
      %vm436 = vcmp.eq.s32.totalorder %v430, 1
      %v437 = vsel %vm431, %v419, 0.0
      %v438 = vsel %vm432, %v420, 0.0
      %v439 = vsel %vm433, %v421, 0.0
      %v440 = vsel %vm434, %v422, 0.0
      %v441 = vsel %vm435, %v423, 0.0
      %v442 = vsel %vm436, %v424, 0.0
      %v443 = vld [vmem:[%s4] sm:$0x1]
      %v444 = vld [vmem:[%s3] sm:$0xff]
      %v445 = vld [vmem:[%s3 + $0x8] sm:$0xff]
      %v446 = vld [vmem:[%s3 + $0x10] sm:$0xff]
      %v447 = vld [vmem:[%s3 + $0x18] sm:$0xff]
      %v448 = vld [vmem:[%s3 + $0x20] sm:$0xff]
      %v449 = vld [vmem:[%s3 + $0x28] sm:$0xff]
      %v450 = vld [vmem:[%s3 + $0x30] sm:$0xff]
      %v451 = vld [vmem:[%s3 + $0x38] sm:$0xff]
      %v452 = vld [vmem:[%s3 + $0x40] sm:$0xff]
      %v453 = vld [vmem:[%s3 + $0x48] sm:$0xff]
      %v454 = vld [vmem:[%s3 + $0x50] sm:$0xff]
      %v455 = vld [vmem:[%s3 + $0x58] sm:$0xff]
      %v456 = vld [vmem:[%s3 + $0x60] sm:$0xff]
      %v457 = vld [vmem:[%s3 + $0x68] sm:$0xff]
      %v458 = vld [vmem:[%s3 + $0x70] sm:$0xff]
      %v459 = vld [vmem:[%s3 + $0x78] sm:$0xff]
      %460 = vmatprep.subr.mxu0 0.0
      %461 = vmatpush1.msra.mxu0 %v444
      %462 = vmatprep.subr.mxu0 0.0
      %463 = vmatpush1.msra.mxu0 %v445
      %464 = vmatprep.subr.mxu0 0.0
      %465 = vmatpush1.msra.mxu0 %v446
      %466 = vmatprep.subr.mxu0 0.0
      %467 = vmatpush1.msra.mxu0 %v447
      %468 = vmatprep.subr.mxu0 0.0
      %469 = vmatpush1.msra.mxu0 %v448
      %470 = vmatprep.subr.mxu0 0.0
      %471 = vmatpush1.msra.mxu0 %v449
      %472 = vmatprep.subr.mxu0 0.0
      %473 = vmatpush1.msra.mxu0 %v450
      %474 = vmatprep.subr.mxu0 0.0
      %475 = vmatpush1.msra.mxu0 %v451
      %476 = vmatprep.subr.mxu0 0.0
      %477 = vmatpush1.msra.mxu0 %v452
      %478 = vmatprep.subr.mxu0 0.0
      %479 = vmatpush1.msra.mxu0 %v453
      %480 = vmatprep.subr.mxu0 0.0
      %481 = vmatpush1.msra.mxu0 %v454
      %482 = vmatprep.subr.mxu0 0.0
      %483 = vmatpush1.msra.mxu0 %v455
      %484 = vmatprep.subr.mxu0 0.0
      %485 = vmatpush1.msra.mxu0 %v456
      %486 = vmatprep.subr.mxu0 0.0
      %487 = vmatpush1.msra.mxu0 %v457
      %488 = vmatprep.subr.mxu0 0.0
      %489 = vmatpush1.msra.mxu0 %v458
      %490 = vmatprep.subr.mxu0 0.0
      %491 = vmatpush1.msra.mxu0 %v459
      %492 = vmatprep.subr.mxu0 0.0
      %493 = vmatpush1.msra.mxu0 0.0
      %494 = vmatprep.subr.mxu0 0.0
      %495 = vmatpush1.msra.mxu0 0.0
      %496 = vmatprep.subr.mxu0 0.0
      %497 = vmatpush1.msra.mxu0 0.0
      %498 = vmatprep.subr.mxu0 0.0
      %499 = vmatpush1.msra.mxu0 0.0
      %500 = vmatprep.subr.mxu0 0.0
      %501 = vmatpush1.msra.mxu0 0.0
      %502 = vmatprep.subr.mxu0 0.0
      %503 = vmatpush1.msra.mxu0 0.0
      %504 = vmatprep.subr.mxu0 0.0
      %505 = vmatpush1.msra.mxu0 0.0
      %506 = vmatprep.subr.mxu0 0.0
      %507 = vmatpush1.msra.mxu0 0.0
      %508 = vmatprep.subr.mxu0 0.0
      %509 = vmatpush1.msra.mxu0 0.0
      %510 = vmatprep.subr.mxu0 0.0
      %511 = vmatpush1.msra.mxu0 0.0
      %512 = vmatprep.subr.mxu0 0.0
      %513 = vmatpush1.msra.mxu0 0.0
      %514 = vmatprep.subr.mxu0 0.0
      %515 = vmatpush1.msra.mxu0 0.0
      %516 = vmatprep.subr.mxu0 0.0
      %517 = vmatpush1.msra.mxu0 0.0
      %518 = vmatprep.subr.mxu0 0.0
      %519 = vmatpush1.msra.mxu0 0.0
      %520 = vmatprep.subr.mxu0 0.0
      %521 = vmatpush1.msra.mxu0 0.0
      %522 = vmatprep.subr.mxu0 0.0
      %523 = vmatpush1.msra.mxu0 0.0
      %524 = vmatprep.mubr.f32.mxu0 0.0
      %525 = vmatmul.mubr.f32.gmra.mrb[0].mxu0 %v437
      %v526 = vpop.f32.mrb[0].mxu0
      %v527 = vadd.f32 0.0, %v526
      %v528 = vpop.f32.mrb[0].mxu0
      %529 = vmatprep.mubr.f32.mxu0 0.0
      %530 = vmatmul.mubr.f32.gmra.mrb[0].mxu0 %v438
      %v531 = vpop.f32.mrb[0].mxu0
      %v532 = vadd.f32 0.0, %v531
      %v533 = vpop.f32.mrb[0].mxu0
      %534 = vmatprep.mubr.f32.mxu0 0.0
      %535 = vmatmul.mubr.f32.gmra.mrb[0].mxu0 %v439
      %v536 = vpop.f32.mrb[0].mxu0
      %v537 = vadd.f32 0.0, %v536
      %v538 = vpop.f32.mrb[0].mxu0
      %539 = vmatprep.mubr.f32.mxu0 0.0
      %540 = vmatmul.mubr.f32.gmra.mrb[0].mxu0 %v440
      %v541 = vpop.f32.mrb[0].mxu0
      %v542 = vadd.f32 0.0, %v541
      %v543 = vpop.f32.mrb[0].mxu0
      %544 = vmatprep.mubr.f32.mxu0 0.0
      %545 = vmatmul.mubr.f32.gmra.mrb[0].mxu0 %v441
      %v546 = vpop.f32.mrb[0].mxu0
      %v547 = vadd.f32 0.0, %v546
      %v548 = vpop.f32.mrb[0].mxu0
      %549 = vmatprep.mubr.f32.mxu0 0.0
      %550 = vmatmul.mubr.f32.gmra.mrb[0].mxu0 %v442
      %v551 = vpop.f32.mrb[0].mxu0
      %v552 = vadd.f32 0.0, %v551
      %v553 = vpop.f32.mrb[0].mxu0
      %554 = vdwg.mxu0
      %s555 = scalar_lea.vmem %s3, 128
      %v556 = vld [vmem:[%s555] sm:$0xff]
      %v557 = vld [vmem:[%s555 + $0x8] sm:$0xff]
      %v558 = vld [vmem:[%s555 + $0x10] sm:$0xff]
      %v559 = vld [vmem:[%s555 + $0x18] sm:$0xff]
      %v560 = vld [vmem:[%s555 + $0x20] sm:$0xff]
      %v561 = vld [vmem:[%s555 + $0x28] sm:$0xff]
      %v562 = vld [vmem:[%s555 + $0x30] sm:$0xff]
      %v563 = vld [vmem:[%s555 + $0x38] sm:$0xff]
      %v564 = vld [vmem:[%s555 + $0x40] sm:$0xff]
      %v565 = vld [vmem:[%s555 + $0x48] sm:$0xff]
      %v566 = vld [vmem:[%s555 + $0x50] sm:$0xff]
      %v567 = vld [vmem:[%s555 + $0x58] sm:$0xff]
      %v568 = vld [vmem:[%s555 + $0x60] sm:$0xff]
      %v569 = vld [vmem:[%s555 + $0x68] sm:$0xff]
      %v570 = vld [vmem:[%s555 + $0x70] sm:$0xff]
      %v571 = vld [vmem:[%s555 + $0x78] sm:$0xff]
      %572 = vmatprep.subr.mxu0 0.0
      %573 = vmatpush1.msra.mxu0 %v556
      %574 = vmatprep.subr.mxu0 0.0
      %575 = vmatpush1.msra.mxu0 %v557
      %576 = vmatprep.subr.mxu0 0.0
      %577 = vmatpush1.msra.mxu0 %v558
      %578 = vmatprep.subr.mxu0 0.0
      %579 = vmatpush1.msra.mxu0 %v559
      %580 = vmatprep.subr.mxu0 0.0
      %581 = vmatpush1.msra.mxu0 %v560
      %582 = vmatprep.subr.mxu0 0.0
      %583 = vmatpush1.msra.mxu0 %v561
      %584 = vmatprep.subr.mxu0 0.0
      %585 = vmatpush1.msra.mxu0 %v562
      %586 = vmatprep.subr.mxu0 0.0
      %587 = vmatpush1.msra.mxu0 %v563
      %588 = vmatprep.subr.mxu0 0.0
      %589 = vmatpush1.msra.mxu0 %v564
      %590 = vmatprep.subr.mxu0 0.0
      %591 = vmatpush1.msra.mxu0 %v565
      %592 = vmatprep.subr.mxu0 0.0
      %593 = vmatpush1.msra.mxu0 %v566
      %594 = vmatprep.subr.mxu0 0.0
      %595 = vmatpush1.msra.mxu0 %v567
      %596 = vmatprep.subr.mxu0 0.0
      %597 = vmatpush1.msra.mxu0 %v568
      %598 = vmatprep.subr.mxu0 0.0
      %599 = vmatpush1.msra.mxu0 %v569
      %600 = vmatprep.subr.mxu0 0.0
      %601 = vmatpush1.msra.mxu0 %v570
      %602 = vmatprep.subr.mxu0 0.0
      %603 = vmatpush1.msra.mxu0 %v571
      %604 = vmatprep.subr.mxu0 0.0
      %605 = vmatpush1.msra.mxu0 0.0
      %606 = vmatprep.subr.mxu0 0.0
      %607 = vmatpush1.msra.mxu0 0.0
      %608 = vmatprep.subr.mxu0 0.0
      %609 = vmatpush1.msra.mxu0 0.0
      %610 = vmatprep.subr.mxu0 0.0
      %611 = vmatpush1.msra.mxu0 0.0
      %612 = vmatprep.subr.mxu0 0.0
      %613 = vmatpush1.msra.mxu0 0.0
      %614 = vmatprep.subr.mxu0 0.0
      %615 = vmatpush1.msra.mxu0 0.0
      %616 = vmatprep.subr.mxu0 0.0
      %617 = vmatpush1.msra.mxu0 0.0
      %618 = vmatprep.subr.mxu0 0.0
      %619 = vmatpush1.msra.mxu0 0.0
      %620 = vmatprep.subr.mxu0 0.0
      %621 = vmatpush1.msra.mxu0 0.0
      %622 = vmatprep.subr.mxu0 0.0
      %623 = vmatpush1.msra.mxu0 0.0
      %624 = vmatprep.subr.mxu0 0.0
      %625 = vmatpush1.msra.mxu0 0.0
      %626 = vmatprep.subr.mxu0 0.0
      %627 = vmatpush1.msra.mxu0 0.0
      %628 = vmatprep.subr.mxu0 0.0
      %629 = vmatpush1.msra.mxu0 0.0
      %630 = vmatprep.subr.mxu0 0.0
      %631 = vmatpush1.msra.mxu0 0.0
      %632 = vmatprep.subr.mxu0 0.0
      %633 = vmatpush1.msra.mxu0 0.0
      %634 = vmatprep.subr.mxu0 0.0
      %635 = vmatpush1.msra.mxu0 0.0
      %636 = vmatprep.mubr.f32.mxu0 0.0
      %637 = vmatmul.mubr.f32.gmra.mrb[0].mxu0 %v437
      %v638 = vpop.f32.mrb[0].mxu0
      %v639 = vadd.f32 0.0, %v638
      %v640 = vpop.f32.mrb[0].mxu0
      %641 = vmatprep.mubr.f32.mxu0 0.0
      %642 = vmatmul.mubr.f32.gmra.mrb[0].mxu0 %v438
      %v643 = vpop.f32.mrb[0].mxu0
      %v644 = vadd.f32 0.0, %v643
      %v645 = vpop.f32.mrb[0].mxu0
      %646 = vmatprep.mubr.f32.mxu0 0.0
      %647 = vmatmul.mubr.f32.gmra.mrb[0].mxu0 %v439
      %v648 = vpop.f32.mrb[0].mxu0
      %v649 = vadd.f32 0.0, %v648
      %v650 = vpop.f32.mrb[0].mxu0
      %651 = vmatprep.mubr.f32.mxu0 0.0
      %652 = vmatmul.mubr.f32.gmra.mrb[0].mxu0 %v440
      %v653 = vpop.f32.mrb[0].mxu0
      %v654 = vadd.f32 0.0, %v653
      %v655 = vpop.f32.mrb[0].mxu0
      %656 = vmatprep.mubr.f32.mxu0 0.0
      %657 = vmatmul.mubr.f32.gmra.mrb[0].mxu0 %v441
      %v658 = vpop.f32.mrb[0].mxu0
      %v659 = vadd.f32 0.0, %v658
      %v660 = vpop.f32.mrb[0].mxu0
      %661 = vmatprep.mubr.f32.mxu0 0.0
      %662 = vmatmul.mubr.f32.gmra.mrb[0].mxu0 %v442
      %v663 = vpop.f32.mrb[0].mxu0
      %v664 = vadd.f32 0.0, %v663
      %v665 = vpop.f32.mrb[0].mxu0
      %666 = vdwg.mxu0
      %s667 = scalar_lea.vmem %s3, 256
      %v668 = vld [vmem:[%s667] sm:$0xff]
      %v669 = vld [vmem:[%s667 + $0x8] sm:$0xff]
      %v670 = vld [vmem:[%s667 + $0x10] sm:$0xff]
      %v671 = vld [vmem:[%s667 + $0x18] sm:$0xff]
      %v672 = vld [vmem:[%s667 + $0x20] sm:$0xff]
      %v673 = vld [vmem:[%s667 + $0x28] sm:$0xff]
      %v674 = vld [vmem:[%s667 + $0x30] sm:$0xff]
      %v675 = vld [vmem:[%s667 + $0x38] sm:$0xff]
      %v676 = vld [vmem:[%s667 + $0x40] sm:$0xff]
      %v677 = vld [vmem:[%s667 + $0x48] sm:$0xff]
      %v678 = vld [vmem:[%s667 + $0x50] sm:$0xff]
      %v679 = vld [vmem:[%s667 + $0x58] sm:$0xff]
      %v680 = vld [vmem:[%s667 + $0x60] sm:$0xff]
      %v681 = vld [vmem:[%s667 + $0x68] sm:$0xff]
      %v682 = vld [vmem:[%s667 + $0x70] sm:$0xff]
      %v683 = vld [vmem:[%s667 + $0x78] sm:$0xff]
      %684 = vmatprep.subr.mxu0 0.0
      %685 = vmatpush1.msra.mxu0 %v668
      %686 = vmatprep.subr.mxu0 0.0
      %687 = vmatpush1.msra.mxu0 %v669
      %688 = vmatprep.subr.mxu0 0.0
      %689 = vmatpush1.msra.mxu0 %v670
      %690 = vmatprep.subr.mxu0 0.0
      %691 = vmatpush1.msra.mxu0 %v671
      %692 = vmatprep.subr.mxu0 0.0
      %693 = vmatpush1.msra.mxu0 %v672
      %694 = vmatprep.subr.mxu0 0.0
      %695 = vmatpush1.msra.mxu0 %v673
      %696 = vmatprep.subr.mxu0 0.0
      %697 = vmatpush1.msra.mxu0 %v674
      %698 = vmatprep.subr.mxu0 0.0
      %699 = vmatpush1.msra.mxu0 %v675
      %700 = vmatprep.subr.mxu0 0.0
      %701 = vmatpush1.msra.mxu0 %v676
      %702 = vmatprep.subr.mxu0 0.0
      %703 = vmatpush1.msra.mxu0 %v677
      %704 = vmatprep.subr.mxu0 0.0
      %705 = vmatpush1.msra.mxu0 %v678
      %706 = vmatprep.subr.mxu0 0.0
      %707 = vmatpush1.msra.mxu0 %v679
      %708 = vmatprep.subr.mxu0 0.0
      %709 = vmatpush1.msra.mxu0 %v680
      %710 = vmatprep.subr.mxu0 0.0
      %711 = vmatpush1.msra.mxu0 %v681
      %712 = vmatprep.subr.mxu0 0.0
      %713 = vmatpush1.msra.mxu0 %v682
      %714 = vmatprep.subr.mxu0 0.0
      %715 = vmatpush1.msra.mxu0 %v683
      %716 = vmatprep.subr.mxu0 0.0
      %717 = vmatpush1.msra.mxu0 0.0
      %718 = vmatprep.subr.mxu0 0.0
      %719 = vmatpush1.msra.mxu0 0.0
      %720 = vmatprep.subr.mxu0 0.0
      %721 = vmatpush1.msra.mxu0 0.0
      %722 = vmatprep.subr.mxu0 0.0
      %723 = vmatpush1.msra.mxu0 0.0
      %724 = vmatprep.subr.mxu0 0.0
      %725 = vmatpush1.msra.mxu0 0.0
      %726 = vmatprep.subr.mxu0 0.0
      %727 = vmatpush1.msra.mxu0 0.0
      %728 = vmatprep.subr.mxu0 0.0
      %729 = vmatpush1.msra.mxu0 0.0
      %730 = vmatprep.subr.mxu0 0.0
      %731 = vmatpush1.msra.mxu0 0.0
      %732 = vmatprep.subr.mxu0 0.0
      %733 = vmatpush1.msra.mxu0 0.0
      %734 = vmatprep.subr.mxu0 0.0
      %735 = vmatpush1.msra.mxu0 0.0
      %736 = vmatprep.subr.mxu0 0.0
      %737 = vmatpush1.msra.mxu0 0.0
      %738 = vmatprep.subr.mxu0 0.0
      %739 = vmatpush1.msra.mxu0 0.0
      %740 = vmatprep.subr.mxu0 0.0
      %741 = vmatpush1.msra.mxu0 0.0
      %742 = vmatprep.subr.mxu0 0.0
      %743 = vmatpush1.msra.mxu0 0.0
      %744 = vmatprep.subr.mxu0 0.0
      %745 = vmatpush1.msra.mxu0 0.0
      %746 = vmatprep.subr.mxu0 0.0
      %747 = vmatpush1.msra.mxu0 0.0
      %748 = vmatprep.mubr.f32.mxu0 0.0
      %749 = vmatmul.mubr.f32.gmra.mrb[0].mxu0 %v437
      %v750 = vpop.f32.mrb[0].mxu0
      %v751 = vadd.f32 0.0, %v750
      %v752 = vpop.f32.mrb[0].mxu0
      %753 = vmatprep.mubr.f32.mxu0 0.0
      %754 = vmatmul.mubr.f32.gmra.mrb[0].mxu0 %v438
      %v755 = vpop.f32.mrb[0].mxu0
      %v756 = vadd.f32 0.0, %v755
      %v757 = vpop.f32.mrb[0].mxu0
      %758 = vmatprep.mubr.f32.mxu0 0.0
      %759 = vmatmul.mubr.f32.gmra.mrb[0].mxu0 %v439
      %v760 = vpop.f32.mrb[0].mxu0
      %v761 = vadd.f32 0.0, %v760
      %v762 = vpop.f32.mrb[0].mxu0
      %763 = vmatprep.mubr.f32.mxu0 0.0
      %764 = vmatmul.mubr.f32.gmra.mrb[0].mxu0 %v440
      %v765 = vpop.f32.mrb[0].mxu0
      %v766 = vadd.f32 0.0, %v765
      %v767 = vpop.f32.mrb[0].mxu0
      %768 = vmatprep.mubr.f32.mxu0 0.0
      %769 = vmatmul.mubr.f32.gmra.mrb[0].mxu0 %v441
      %v770 = vpop.f32.mrb[0].mxu0
      %v771 = vadd.f32 0.0, %v770
      %v772 = vpop.f32.mrb[0].mxu0
      %773 = vmatprep.mubr.f32.mxu0 0.0
      %774 = vmatmul.mubr.f32.gmra.mrb[0].mxu0 %v442
      %v775 = vpop.f32.mrb[0].mxu0
      %v776 = vadd.f32 0.0, %v775
      %v777 = vpop.f32.mrb[0].mxu0
      %778 = vdwg.mxu0
      %vm785 = vcmask 1040384
      %v786 = vrot.slane %v527, 7
      %v787 = vrot.slane %v532, 7
      %v788 = vsel %vm785, %v786, %v787
      %v789 = vrot.slane %v537, 7
      %v790 = vsel %vm785, %v787, %v789
      %v791 = vrot.slane %v542, 7
      %v792 = vsel %vm785, %v789, %v791
      %v793 = vrot.slane %v547, 7
      %v794 = vsel %vm785, %v791, %v793
      %v795 = vrot.slane %v552, 7
      %v796 = vsel %vm785, %v793, %v795
      %v803 = vsel %vm785, 0.0, %v786
      %vm810 = vcmask 1046528
      %v811 = vrot.slane %v751, 1
      %v812 = vrot.slane %v756, 1
      %v813 = vsel %vm810, %v811, %v812
      %v814 = vrot.slane %v761, 1
      %v815 = vsel %vm810, %v812, %v814
      %v816 = vrot.slane %v766, 1
      %v817 = vsel %vm810, %v814, %v816
      %v818 = vrot.slane %v771, 1
      %v819 = vsel %vm810, %v816, %v818
      %v820 = vrot.slane %v776, 1
      %v821 = vsel %vm810, %v818, %v820
      %v828 = vsel %vm810, %v820, 0.0
      %v829 = vadd.f32 %v803, %v639
      %v830 = vadd.f32 %v788, %v644
      %v831 = vadd.f32 %v790, %v649
      %v832 = vadd.f32 %v792, %v654
      %v833 = vadd.f32 %v794, %v659
      %v834 = vadd.f32 %v796, %v664
      %v835 = vadd.f32 %v829, %v813
      %v836 = vadd.f32 %v830, %v815
      %v837 = vadd.f32 %v831, %v817
      %v838 = vadd.f32 %v832, %v819
      %v839 = vadd.f32 %v833, %v821
      %v840 = vadd.f32 %v834, %v828
      %v842 = vlaneseq
      %v843 = vshrl.u32 %v842, 7
      %v844 = vsub.s32 0, %v843
      %v845 = vrot.slane %v443, %v844
      %v847 = vadd.f32 %v835, %v845
      %v848 = vadd.f32 %v836, %v845
      %v849 = vadd.f32 %v837, %v845
      %v850 = vadd.f32 %v838, %v845
      %v851 = vadd.f32 %v839, %v845
      %v852 = vadd.f32 %v840, %v845
      %v853 = vsel %vm431, %v847, 0.0
      %v854 = vsel %vm432, %v848, 0.0
      %v855 = vsel %vm433, %v849, 0.0
      %v856 = vsel %vm434, %v850, 0.0
      %v857 = vsel %vm435, %v851, 0.0
      %v858 = vsel %vm436, %v852, 0.0
      %859 = vst [vmem:[%s260] sm:$0xff] %v853
      %860 = vst [vmem:[%s260 + $0x8] sm:$0xff] %v854
      %861 = vst [vmem:[%s260 + $0x10] sm:$0xff] %v855
      %862 = vst [vmem:[%s260 + $0x18] sm:$0xff] %v856
      %863 = vst [vmem:[%s260 + $0x20] sm:$0xff] %v857
      %864 = vst [vmem:[%s260 + $0x28] sm:$0xff] %v858
      %v865 = vadd.f32 %v853, %v854
      %v866 = vadd.f32 %v865, %v855
      %v867 = vadd.f32 %v866, %v856
      %v868 = vadd.f32 %v867, %v857
      %v869 = vadd.f32 %v868, %v858
      %v870 = vrot.slane %v869, 4
      %v871 = vadd.f32 %v869, %v870
      %v872 = vrot.slane %v871, 2
      %v873 = vadd.f32 %v871, %v872
      %v874 = vrot.slane %v873, 1
      %v875 = vadd.f32 %v873, %v874
      %v876 = vmul.f32 %v853, %v853
      %v877 = vmul.f32 %v854, %v854
      %v878 = vmul.f32 %v855, %v855
      %v879 = vmul.f32 %v856, %v856
      %v880 = vmul.f32 %v857, %v857
      %v881 = vmul.f32 %v858, %v858
      %v882 = vadd.f32 %v876, %v877
      %v883 = vadd.f32 %v882, %v878
      %v884 = vadd.f32 %v883, %v879
      %v885 = vadd.f32 %v884, %v880
      %v886 = vadd.f32 %v885, %v881
      %v887 = vrot.slane %v886, 4
      %v888 = vadd.f32 %v886, %v887
      %v889 = vrot.slane %v888, 2
      %v890 = vadd.f32 %v888, %v889
      %v891 = vrot.slane %v890, 1
      %v892 = vadd.f32 %v890, %v891
      %v893 = vsel %vm785, %v875, %v892
      %894 = vst [vmem:[%s265] sm:$0x3] %v893
      %s895 = smul.u32 6, %s18
      %p896 = scmp.lt.s32.totalorder %s895, 11
      %s897 = scalar_select %p896, %s895, 11
      %s898 = smul.addr %s897, 8
      %s899 = scalar_lea.vmem %s5, %s898
      %p900 = scmp.lt.s32.totalorder %s18, 1
      %s901 = scalar_select %p900, %s18, 1
      %s902 = smul.addr %s901, 2
      %s903 = scalar_lea.vmem %s6, %s902
      // Predicated region
      $region41: #{conv_block_forward.4} parent=39 // pred_check
        %p904 = pneg %p146
      $region42: #{conv_block_forward.4} parent=39 // pred_check_branch
        %906 = sbr.rel (%p904) target = $region44
      $region43: #{conv_block_forward.4} parent=39 // pred_region
        %s907 = smul.u32 6, %s18
      $region44: #{conv_block_forward.4} parent=39 // pred_fallthru
        _
      // Predicated region
      $region45: #{conv_block_forward.4} parent=39 // pred_check
        %p908 = pneg %p172
      $region46: #{conv_block_forward.4} parent=39 // pred_check_branch
        %910 = sbr.rel (%p908) target = $region48
      $region47: #{conv_block_forward.4} parent=39 // pred_region
        _
      $region48: #{conv_block_forward.4} parent=39 // pred_fallthru
        _
    $region40: #{conv_block_forward.4} parent=5 // pred_fallthru
      _
    %p911 = scmp.le.s32.totalorder 2, %s13
    // Predicated region
    $region49: #{conv_block_forward.4} parent=5 // pred_check
      %p912 = pneg %p911
    $region50: #{conv_block_forward.4} parent=5 // pred_check_branch
      %914 = sbr.rel (%p912) target = $region52
    $region51: #{conv_block_forward.4} parent=5 // pred_region
      %s915 = ssub.s32 %s13, 2
      // Predicated region
      $region53: #{conv_block_forward.4} parent=51 // pred_check
        %p916 = pneg %p152
      $region54: #{conv_block_forward.4} parent=51 // pred_check_branch
        %918 = sbr.rel (%p916) target = $region56
      $region55: #{conv_block_forward.4} parent=51 // pred_region
        %s919 = smul.u32 6, %s19
        %p920 = scmp.lt.s32.totalorder %s919, 11
        %s921 = scalar_select %p920, %s919, 11
        %s922 = smul.addr %s921, 8
        %s923 = scalar_lea.vmem %s5, %s922
      $region56: #{conv_block_forward.4} parent=51 // pred_fallthru
        _
      // Predicated region
      $region57: #{conv_block_forward.4} parent=51 // pred_check
        %p924 = pneg %p178
      $region58: #{conv_block_forward.4} parent=51 // pred_check_branch
        %926 = sbr.rel (%p924) target = $region60
      $region59: #{conv_block_forward.4} parent=51 // pred_region
        %p927 = scmp.lt.s32.totalorder %s19, 1
        %s928 = scalar_select %p927, %s19, 1
        %s929 = smul.addr %s928, 2
        %s930 = scalar_lea.vmem %s6, %s929
      $region60: #{conv_block_forward.4} parent=51 // pred_fallthru
        _
    $region52: #{conv_block_forward.4} parent=5 // pred_fallthru
      _
  $region6: #{conv_block_forward.4} parent=0 // loop_footer
    %s17 = sadd.s32 1, %s13
  $region7: #{conv_block_forward.4} parent=0 // loop_footer_branch
    %12 = sbr.rel target = $region3
  $region8: #{conv_block_forward.4} parent=0 // loop_exit
    _

// kernel: conv_block_forward.3
$region0: #{conv_block_forward.3}
  #allocation0 [shape = 'u32[]', space=smem, size = 0x4, offset = 0x4, fixed_abs, tag = 'smem constant byte address 0x4 - core index']
  #allocation1 [shape = 'u32[144,128]{1,0:T(1,128)}', space=vmem, size = 0x12000, scoped, tag = 'internal scratch']
  %s0 = inlined_call_operand.vmem [shape: f32[96,128], index: 0, kind: input, shape index: {}]
  %s1 = inlined_call_operand.vmem [shape: f32[3,128,128], index: 1, kind: input, shape index: {}]
  %s2 = inlined_call_operand.vmem [shape: f32[1,128], index: 2, kind: input, shape index: {}]
  %s3 = inlined_call_operand.vmem [shape: f32[96,128], index: 3, kind: output, shape index: {0}]
  %s4 = inlined_call_operand.vmem [shape: f32[2,2,128], index: 4, kind: output, shape index: {1}]
  %5 = xla_tuple %s3, %s4
  %s6 = sld [smem:[#allocation0]]
  $region53: #{conv_block_forward.3} parent=0
    _
  %s8 = ssub.s32 1, %s6
  %s9 = scalar_select 0, %s8, %s6
  loop: start=0, step=1, limit=4
  $region2: #{conv_block_forward.3} parent=0 // loop_pre_header
    _
  $region3: #{conv_block_forward.3} parent=0 // loop_header
    %s11 = sphi 0, %s15
    %p12 = scmp.ge.s32.totalorder %s11, 4
    %s21 = sphi 0, %s23
    %s24 = sphi 0, %s21
    %s25 = sphi 0, %s24
    %s41 = sphi 0, %s25
    %s45 = sphi 0, %s45
    %s47 = sphi 0, %s45
    %s48 = sphi 0, %s47
    %s62 = sphi 0, %s48
    %s66 = sphi 0, %s66
    %s68 = sphi 0, %s66
    %s69 = sphi 0, %s68
    %s83 = sphi 0, %s69
    %s89 = sphi 0, %s91
    %s92 = sphi 0, %s89
    %s93 = sphi 0, %s92
    %s109 = sphi 0, %s93
    %s115 = sphi 0, %s117
    %s118 = sphi 0, %s115
    %s119 = sphi 0, %s118
    %s135 = sphi 0, %s119
  $region4: #{conv_block_forward.3} parent=0 // loop_header_branch
    %14 = sbr.rel (%p12) target = $region8
  $region5: #{conv_block_forward.3} parent=0 // loop_body
    %s16 = ssub.s32 %s11, 1
    %s17 = ssub.s32 %s11, 2
    %s18 = sadd.s32 %s11, 1
    %s19 = ssub.s32 %s11, %s18
    %p20 = scmp.eq.s32.totalorder %s19, 0
    %s22 = sadd.s32 %s21, 1
    %s23 = scalar_select %p20, %s21, %s22
    %p26 = pneg %p20
    %p27 = scmp.eq.s32.totalorder %s11, 1
    %p28 = por %p26, %p27
    %p29 = scmp.ne.s32.totalorder %s21, %s24
    %p30 = scmp.eq.s32.totalorder %s11, 0
    %p31 = por %p29, %p30
    %p32 = scmp.ne.s32.totalorder %s21, %s24
    %p33 = scmp.eq.s32.totalorder %s16, 1
    %p34 = por %p32, %p33
    %p35 = scmp.ne.s32.totalorder %s24, %s25
    %p36 = scmp.eq.s32.totalorder %s16, 0
    %p37 = por %p35, %p36
    %p38 = scmp.ne.s32.totalorder %s24, %s25
    %p39 = scmp.eq.s32.totalorder %s17, 1
    %p40 = por %p38, %p39
    %p42 = scmp.ne.s32.totalorder %s25, %s41
    %p43 = scmp.eq.s32.totalorder %s17, 0
    %p44 = por %p42, %p43
    %s46 = sadd.s32 %s45, 1
    %p49 = scmp.eq.s32.totalorder %s11, 1
    %p50 = scmp.ne.s32.totalorder %s45, %s47
    %p51 = scmp.eq.s32.totalorder %s11, 0
    %p52 = por %p50, %p51
    %p53 = scmp.ne.s32.totalorder %s45, %s47
    %p54 = scmp.eq.s32.totalorder %s16, 1
    %p55 = por %p53, %p54
    %p56 = scmp.ne.s32.totalorder %s47, %s48
    %p57 = scmp.eq.s32.totalorder %s16, 0
    %p58 = por %p56, %p57
    %p59 = scmp.ne.s32.totalorder %s47, %s48
    %p60 = scmp.eq.s32.totalorder %s17, 1
    %p61 = por %p59, %p60
    %p63 = scmp.ne.s32.totalorder %s48, %s62
    %p64 = scmp.eq.s32.totalorder %s17, 0
    %p65 = por %p63, %p64
    %s67 = sadd.s32 %s66, 1
    %p70 = scmp.eq.s32.totalorder %s11, 1
    %p71 = scmp.ne.s32.totalorder %s66, %s68
    %p72 = scmp.eq.s32.totalorder %s11, 0
    %p73 = por %p71, %p72
    %p74 = scmp.ne.s32.totalorder %s66, %s68
    %p75 = scmp.eq.s32.totalorder %s16, 1
    %p76 = por %p74, %p75
    %p77 = scmp.ne.s32.totalorder %s68, %s69
    %p78 = scmp.eq.s32.totalorder %s16, 0
    %p79 = por %p77, %p78
    %p80 = scmp.ne.s32.totalorder %s68, %s69
    %p81 = scmp.eq.s32.totalorder %s17, 1
    %p82 = por %p80, %p81
    %p84 = scmp.ne.s32.totalorder %s69, %s83
    %p85 = scmp.eq.s32.totalorder %s17, 0
    %p86 = por %p84, %p85
    %s87 = ssub.s32 %s11, %s18
    %p88 = scmp.eq.s32.totalorder %s87, 0
    %s90 = sadd.s32 %s89, 1
    %s91 = scalar_select %p88, %s89, %s90
    %p94 = pneg %p88
    %p95 = scmp.eq.s32.totalorder %s11, 1
    %p96 = por %p94, %p95
    %p97 = scmp.ne.s32.totalorder %s89, %s92
    %p98 = scmp.eq.s32.totalorder %s11, 0
    %p99 = por %p97, %p98
    %p100 = scmp.ne.s32.totalorder %s89, %s92
    %p101 = scmp.eq.s32.totalorder %s16, 1
    %p102 = por %p100, %p101
    %p103 = scmp.ne.s32.totalorder %s92, %s93
    %p104 = scmp.eq.s32.totalorder %s16, 0
    %p105 = por %p103, %p104
    %p106 = scmp.ne.s32.totalorder %s92, %s93
    %p107 = scmp.eq.s32.totalorder %s17, 1
    %p108 = por %p106, %p107
    %p110 = scmp.ne.s32.totalorder %s93, %s109
    %p111 = scmp.eq.s32.totalorder %s17, 0
    %p112 = por %p110, %p111
    %s113 = ssub.s32 %s11, %s18
    %p114 = scmp.eq.s32.totalorder %s113, 0
    %s116 = sadd.s32 %s115, 1
    %s117 = scalar_select %p114, %s115, %s116
    %p120 = pneg %p114
    %p121 = scmp.eq.s32.totalorder %s11, 1
    %p122 = por %p120, %p121
    %p123 = scmp.ne.s32.totalorder %s115, %s118
    %p124 = scmp.eq.s32.totalorder %s11, 0
    %p125 = por %p123, %p124
    %p126 = scmp.ne.s32.totalorder %s115, %s118
    %p127 = scmp.eq.s32.totalorder %s16, 1
    %p128 = por %p126, %p127
    %p129 = scmp.ne.s32.totalorder %s118, %s119
    %p130 = scmp.eq.s32.totalorder %s16, 0
    %p131 = por %p129, %p130
    %p132 = scmp.ne.s32.totalorder %s118, %s119
    %p133 = scmp.eq.s32.totalorder %s17, 1
    %p134 = por %p132, %p133
    %p136 = scmp.ne.s32.totalorder %s119, %s135
    %p137 = scmp.eq.s32.totalorder %s17, 0
    %p138 = por %p136, %p137
    %p139 = scmp.le.s32.totalorder 1, %s11
    %p140 = scmp.lt.s32.totalorder %s11, 3
    %p141 = pnand %p139, %p140
    %p142 = pneg %p141
    // Predicated region
    $region9: #{conv_block_forward.3} parent=5 // pred_check
      _
    $region10: #{conv_block_forward.3} parent=5 // pred_check_branch
      %144 = sbr.rel (%p141) target = $region12
    $region11: #{conv_block_forward.3} parent=5 // pred_region
      %s145 = ssub.s32 %s11, 1
      // Predicated region
      $region13: #{conv_block_forward.3} parent=11 // pred_check
        %p146 = pneg %p58
      $region14: #{conv_block_forward.3} parent=11 // pred_check_branch
        %148 = sbr.rel (%p146) target = $region16
      $region15: #{conv_block_forward.3} parent=11 // pred_region
        _
      $region16: #{conv_block_forward.3} parent=11 // pred_fallthru
        _
      // Predicated region
      $region17: #{conv_block_forward.3} parent=11 // pred_check
        %p149 = pneg %p79
      $region18: #{conv_block_forward.3} parent=11 // pred_check_branch
        %151 = sbr.rel (%p149) target = $region20
      $region19: #{conv_block_forward.3} parent=11 // pred_region
        _
      $region20: #{conv_block_forward.3} parent=11 // pred_fallthru
        _
    $region12: #{conv_block_forward.3} parent=5 // pred_fallthru
      _
    %p152 = scmp.lt.s32.totalorder %s11, 2
    // Predicated region
    $region21: #{conv_block_forward.3} parent=5 // pred_check
      %p153 = pneg %p152
    $region22: #{conv_block_forward.3} parent=5 // pred_check_branch
      %155 = sbr.rel (%p153) target = $region24
    $region23: #{conv_block_forward.3} parent=5 // pred_region
      // Predicated region
      $region25: #{conv_block_forward.3} parent=23 // pred_check
        %p156 = pneg %p31
      $region26: #{conv_block_forward.3} parent=23 // pred_check_branch
        %158 = sbr.rel (%p156) target = $region28
      $region27: #{conv_block_forward.3} parent=23 // pred_region
        %s159 = smul.u32 6, %s11
        %p160 = scmp.lt.s32.totalorder %s159, 11
        %s161 = scalar_select %p160, %s159, 11
        %s162 = smul.addr %s161, 8
        %s163 = scalar_lea.vmem %s0, %s162
        %s164 = smul.u32 6, %s11
      $region28: #{conv_block_forward.3} parent=23 // pred_fallthru
        _
    $region24: #{conv_block_forward.3} parent=5 // pred_fallthru
      _
    %p165 = scmp.le.s32.totalorder 1, %s11
    %p166 = scmp.lt.s32.totalorder %s11, 3
    %p167 = pnand %p165, %p166
    %p168 = pneg %p167
    // Predicated region
    $region29: #{conv_block_forward.3} parent=5 // pred_check
      _
    $region30: #{conv_block_forward.3} parent=5 // pred_check_branch
      %170 = sbr.rel (%p167) target = $region32
    $region31: #{conv_block_forward.3} parent=5 // pred_region
      %s171 = ssub.s32 %s11, 1
      %s172 = smul.u32 6, %s16
      %p173 = scmp.lt.s32.totalorder %s172, 11
      %s174 = scalar_select %p173, %s172, 11
      %s175 = smul.addr %s174, 8
      %s176 = scalar_lea.vmem %s0, %s175
      %p177 = pneg %p37
      %p178 = pneg %p34
      %p179 = pneg %p58
      %p180 = pneg %p55
      %p181 = pneg %p79
      %p182 = pneg %p76
      %p183 = pneg %p105
      %p184 = pneg %p102
      %s185 = smul.u32 6, %s16
      %p186 = scmp.lt.s32.totalorder %s185, 11
      %s187 = scalar_select %p186, %s185, 11
      %s188 = smul.addr %s187, 8
      %s189 = scalar_lea.vmem %s3, %s188
      %p190 = pneg %p131
      %p191 = pneg %p128
      %p192 = scmp.lt.s32.totalorder %s16, 1
      %s193 = scalar_select %p192, %s16, 1
      %s194 = smul.addr %s193, 2
      %s195 = scalar_lea.vmem %s4, %s194
      %s196 = smul.u32 6, %s16
      %p197 = scmp.lt.s32.totalorder %s196, 11
      %s198 = scalar_select %p197, %s196, 11
      %s199 = smul.addr %s198, 8
      %s200 = scalar_lea.vmem %s0, %s199
      %s201 = smul.u32 6, %s16
      %s202 = smul.u32 6, %s16
      %p203 = scmp.lt.s32.totalorder %s202, 11
      %s204 = scalar_select %p203, %s202, 11
      %s205 = smul.addr %s204, 8
      %s206 = scalar_lea.vmem %s3, %s205
      %s207 = smul.u32 6, %s16
      %p208 = scmp.lt.s32.totalorder %s16, 1
      %s209 = scalar_select %p208, %s16, 1
      %s210 = smul.addr %s209, 2
      %s211 = scalar_lea.vmem %s4, %s210
      %v212 = vlaneseq
      %v213 = vshrl.u32 %v212, 7
      %v214 = vadd.s32 %v213, 8
      %v215 = vadd.s32 %v213, 16
      %v216 = vadd.s32 %v213, 24
      %v217 = vadd.s32 %v213, 32
      %v218 = vadd.s32 %v213, 40
      %vm219 = vcmp.lt.s32.totalorder %v213, 0
      %v220 = vsub.s32 0, %v213
      %v221 = vsel %vm219, %v220, %v213
      %v222 = vmul.u32.u64.compose %v221, 2863311531
      %v223 = vextract.low.u32 %v222
      %v224 = vextract.high.u32 %v222
      %v225 = vshrl.u32 %v224, 4
      %v226 = vmul.u32 %v225, 24
      %v227 = vsub.s32 %v221, %v226
      %v228 = vsub.s32 0, %v227
      %v229 = vsel %vm219, %v228, %v227
      %vm230 = vcmp.lt.s32.totalorder %v214, 0
      %v231 = vsub.s32 0, %v214
      %v232 = vsel %vm230, %v231, %v214
      %v233 = vmul.u32.u64.compose %v232, 2863311531
      %v234 = vextract.low.u32 %v233
      %v235 = vextract.high.u32 %v233
      %v236 = vshrl.u32 %v235, 4
      %v237 = vmul.u32 %v236, 24
      %v238 = vsub.s32 %v232, %v237
      %v239 = vsub.s32 0, %v238
      %v240 = vsel %vm230, %v239, %v238
      %vm241 = vcmp.lt.s32.totalorder %v215, 0
      %v242 = vsub.s32 0, %v215
      %v243 = vsel %vm241, %v242, %v215
      %v244 = vmul.u32.u64.compose %v243, 2863311531
      %v245 = vextract.low.u32 %v244
      %v246 = vextract.high.u32 %v244
      %v247 = vshrl.u32 %v246, 4
      %v248 = vmul.u32 %v247, 24
      %v249 = vsub.s32 %v243, %v248
      %v250 = vsub.s32 0, %v249
      %v251 = vsel %vm241, %v250, %v249
      %vm252 = vcmp.lt.s32.totalorder %v216, 0
      %v253 = vsub.s32 0, %v216
      %v254 = vsel %vm252, %v253, %v216
      %v255 = vmul.u32.u64.compose %v254, 2863311531
      %v256 = vextract.low.u32 %v255
      %v257 = vextract.high.u32 %v255
      %v258 = vshrl.u32 %v257, 4
      %v259 = vmul.u32 %v258, 24
      %v260 = vsub.s32 %v254, %v259
      %v261 = vsub.s32 0, %v260
      %v262 = vsel %vm252, %v261, %v260
      %vm263 = vcmp.lt.s32.totalorder %v217, 0
      %v264 = vsub.s32 0, %v217
      %v265 = vsel %vm263, %v264, %v217
      %v266 = vmul.u32.u64.compose %v265, 2863311531
      %v267 = vextract.low.u32 %v266
      %v268 = vextract.high.u32 %v266
      %v269 = vshrl.u32 %v268, 4
      %v270 = vmul.u32 %v269, 24
      %v271 = vsub.s32 %v265, %v270
      %v272 = vsub.s32 0, %v271
      %v273 = vsel %vm263, %v272, %v271
      %vm274 = vcmp.lt.s32.totalorder %v218, 0
      %v275 = vsub.s32 0, %v218
      %v276 = vsel %vm274, %v275, %v218
      %v277 = vmul.u32.u64.compose %v276, 2863311531
      %v278 = vextract.low.u32 %v277
      %v279 = vextract.high.u32 %v277
      %v280 = vshrl.u32 %v279, 4
      %v281 = vmul.u32 %v280, 24
      %v282 = vsub.s32 %v276, %v281
      %v283 = vsub.s32 0, %v282
      %v284 = vsel %vm274, %v283, %v282
      %vm285 = vcmp.ne.s32.totalorder %v229, 0
      %vm286 = vcmp.ne.s32.totalorder %v240, 0
      %vm287 = vcmp.ne.s32.totalorder %v251, 0
      %vm288 = vcmp.ne.s32.totalorder %v262, 0
      %vm289 = vcmp.ne.s32.totalorder %v273, 0
      %vm290 = vcmp.ne.s32.totalorder %v284, 0
      %vm291 = vcmp.lt.s32.totalorder %v229, 0
      %vm292 = vcmp.lt.s32.totalorder %v240, 0
      %vm293 = vcmp.lt.s32.totalorder %v251, 0
      %vm294 = vcmp.lt.s32.totalorder %v262, 0
      %vm295 = vcmp.lt.s32.totalorder %v273, 0
      %vm296 = vcmp.lt.s32.totalorder %v284, 0
      %vm297 = vmand %vm291, %vm285
      %vm298 = vmand %vm292, %vm286
      %vm299 = vmand %vm293, %vm287
      %vm300 = vmand %vm294, %vm288
      %vm301 = vmand %vm295, %vm289
      %vm302 = vmand %vm296, %vm290
      %v303 = vadd.s32 %v229, 24
      %v304 = vadd.s32 %v240, 24
      %v305 = vadd.s32 %v251, 24
      %v306 = vadd.s32 %v262, 24
      %v307 = vadd.s32 %v273, 24
      %v308 = vadd.s32 %v284, 24
      %v309 = vsel %vm297, %v303, %v229
      %v310 = vsel %vm298, %v304, %v240
      %v311 = vsel %vm299, %v305, %v251
      %v312 = vsel %vm300, %v306, %v262
      %v313 = vsel %vm301, %v307, %v273
      %v314 = vsel %vm302, %v308, %v284
      %vm315 = vcmp.ge.s32.totalorder %v309, 1
      %vm316 = vcmp.ge.s32.totalorder %v310, 1
      %vm317 = vcmp.ge.s32.totalorder %v311, 1
      %vm318 = vcmp.ge.s32.totalorder %v312, 1
      %vm319 = vcmp.ge.s32.totalorder %v313, 1
      %vm320 = vcmp.ge.s32.totalorder %v314, 1
      %vm321 = vcmp.le.s32.totalorder %v309, 16
      %vm322 = vcmp.le.s32.totalorder %v310, 16
      %vm323 = vcmp.le.s32.totalorder %v311, 16
      %vm324 = vcmp.le.s32.totalorder %v312, 16
      %vm325 = vcmp.le.s32.totalorder %v313, 16
      %vm326 = vcmp.le.s32.totalorder %v314, 16
      %vm327 = vmand %vm315, %vm321
      %vm328 = vmand %vm316, %vm322
      %vm329 = vmand %vm317, %vm323
      %vm330 = vmand %vm318, %vm324
      %vm331 = vmand %vm319, %vm325
      %vm332 = vmand %vm320, %vm326
      %v333 = vld [vmem:[%s200] sm:$0xff]
      %v334 = vld [vmem:[%s200 + $0x8] sm:$0xff]
      %v335 = vld [vmem:[%s200 + $0x10] sm:$0xff]
      %v336 = vld [vmem:[%s200 + $0x18] sm:$0xff]
      %v337 = vld [vmem:[%s200 + $0x20] sm:$0xff]
      %v338 = vld [vmem:[%s200 + $0x28] sm:$0xff]
      %v339 = vld [vmem:[%s2] sm:$0x1]
      %v340 = vld [vmem:[%s1] sm:$0xff]
      %v341 = vld [vmem:[%s1 + $0x8] sm:$0xff]
      %v342 = vld [vmem:[%s1 + $0x10] sm:$0xff]
      %v343 = vld [vmem:[%s1 + $0x18] sm:$0xff]
      %v344 = vld [vmem:[%s1 + $0x20] sm:$0xff]
      %v345 = vld [vmem:[%s1 + $0x28] sm:$0xff]
      %v346 = vld [vmem:[%s1 + $0x30] sm:$0xff]
      %v347 = vld [vmem:[%s1 + $0x38] sm:$0xff]
      %v348 = vld [vmem:[%s1 + $0x40] sm:$0xff]
      %v349 = vld [vmem:[%s1 + $0x48] sm:$0xff]
      %v350 = vld [vmem:[%s1 + $0x50] sm:$0xff]
      %v351 = vld [vmem:[%s1 + $0x58] sm:$0xff]
      %v352 = vld [vmem:[%s1 + $0x60] sm:$0xff]
      %v353 = vld [vmem:[%s1 + $0x68] sm:$0xff]
      %v354 = vld [vmem:[%s1 + $0x70] sm:$0xff]
      %v355 = vld [vmem:[%s1 + $0x78] sm:$0xff]
      %356 = vmatprep.subr.mxu0 0.0
      %357 = vmatpush1.msra.mxu0 %v340
      %358 = vmatprep.subr.mxu0 0.0
      %359 = vmatpush1.msra.mxu0 %v341
      %360 = vmatprep.subr.mxu0 0.0
      %361 = vmatpush1.msra.mxu0 %v342
      %362 = vmatprep.subr.mxu0 0.0
      %363 = vmatpush1.msra.mxu0 %v343
      %364 = vmatprep.subr.mxu0 0.0
      %365 = vmatpush1.msra.mxu0 %v344
      %366 = vmatprep.subr.mxu0 0.0
      %367 = vmatpush1.msra.mxu0 %v345
      %368 = vmatprep.subr.mxu0 0.0
      %369 = vmatpush1.msra.mxu0 %v346
      %370 = vmatprep.subr.mxu0 0.0
      %371 = vmatpush1.msra.mxu0 %v347
      %372 = vmatprep.subr.mxu0 0.0
      %373 = vmatpush1.msra.mxu0 %v348
      %374 = vmatprep.subr.mxu0 0.0
      %375 = vmatpush1.msra.mxu0 %v349
      %376 = vmatprep.subr.mxu0 0.0
      %377 = vmatpush1.msra.mxu0 %v350
      %378 = vmatprep.subr.mxu0 0.0
      %379 = vmatpush1.msra.mxu0 %v351
      %380 = vmatprep.subr.mxu0 0.0
      %381 = vmatpush1.msra.mxu0 %v352
      %382 = vmatprep.subr.mxu0 0.0
      %383 = vmatpush1.msra.mxu0 %v353
      %384 = vmatprep.subr.mxu0 0.0
      %385 = vmatpush1.msra.mxu0 %v354
      %386 = vmatprep.subr.mxu0 0.0
      %387 = vmatpush1.msra.mxu0 %v355
      %388 = vmatprep.subr.mxu0 0.0
      %389 = vmatpush1.msra.mxu0 0.0
      %390 = vmatprep.subr.mxu0 0.0
      %391 = vmatpush1.msra.mxu0 0.0
      %392 = vmatprep.subr.mxu0 0.0
      %393 = vmatpush1.msra.mxu0 0.0
      %394 = vmatprep.subr.mxu0 0.0
      %395 = vmatpush1.msra.mxu0 0.0
      %396 = vmatprep.subr.mxu0 0.0
      %397 = vmatpush1.msra.mxu0 0.0
      %398 = vmatprep.subr.mxu0 0.0
      %399 = vmatpush1.msra.mxu0 0.0
      %400 = vmatprep.subr.mxu0 0.0
      %401 = vmatpush1.msra.mxu0 0.0
      %402 = vmatprep.subr.mxu0 0.0
      %403 = vmatpush1.msra.mxu0 0.0
      %404 = vmatprep.subr.mxu0 0.0
      %405 = vmatpush1.msra.mxu0 0.0
      %406 = vmatprep.subr.mxu0 0.0
      %407 = vmatpush1.msra.mxu0 0.0
      %408 = vmatprep.subr.mxu0 0.0
      %409 = vmatpush1.msra.mxu0 0.0
      %410 = vmatprep.subr.mxu0 0.0
      %411 = vmatpush1.msra.mxu0 0.0
      %412 = vmatprep.subr.mxu0 0.0
      %413 = vmatpush1.msra.mxu0 0.0
      %414 = vmatprep.subr.mxu0 0.0
      %415 = vmatpush1.msra.mxu0 0.0
      %416 = vmatprep.subr.mxu0 0.0
      %417 = vmatpush1.msra.mxu0 0.0
      %418 = vmatprep.subr.mxu0 0.0
      %419 = vmatpush1.msra.mxu0 0.0
      %420 = vmatprep.mubr.f32.mxu0 0.0
      %421 = vmatmul.mubr.f32.gmra.mrb[0].mxu0 %v333
      %v422 = vpop.f32.mrb[0].mxu0
      %v423 = vadd.f32 0.0, %v422
      %v424 = vpop.f32.mrb[0].mxu0
      %425 = vmatprep.mubr.f32.mxu0 0.0
      %426 = vmatmul.mubr.f32.gmra.mrb[0].mxu0 %v334
      %v427 = vpop.f32.mrb[0].mxu0
      %v428 = vadd.f32 0.0, %v427
      %v429 = vpop.f32.mrb[0].mxu0
      %430 = vmatprep.mubr.f32.mxu0 0.0
      %431 = vmatmul.mubr.f32.gmra.mrb[0].mxu0 %v335
      %v432 = vpop.f32.mrb[0].mxu0
      %v433 = vadd.f32 0.0, %v432
      %v434 = vpop.f32.mrb[0].mxu0
      %435 = vmatprep.mubr.f32.mxu0 0.0
      %436 = vmatmul.mubr.f32.gmra.mrb[0].mxu0 %v336
      %v437 = vpop.f32.mrb[0].mxu0
      %v438 = vadd.f32 0.0, %v437
      %v439 = vpop.f32.mrb[0].mxu0
      %440 = vmatprep.mubr.f32.mxu0 0.0
      %441 = vmatmul.mubr.f32.gmra.mrb[0].mxu0 %v337
      %v442 = vpop.f32.mrb[0].mxu0
      %v443 = vadd.f32 0.0, %v442
      %v444 = vpop.f32.mrb[0].mxu0
      %445 = vmatprep.mubr.f32.mxu0 0.0
      %446 = vmatmul.mubr.f32.gmra.mrb[0].mxu0 %v338
      %v447 = vpop.f32.mrb[0].mxu0
      %v448 = vadd.f32 0.0, %v447
      %v449 = vpop.f32.mrb[0].mxu0
      %450 = vdwg.mxu0
      %s451 = scalar_lea.vmem %s1, 128
      %v452 = vld [vmem:[%s451] sm:$0xff]
      %v453 = vld [vmem:[%s451 + $0x8] sm:$0xff]
      %v454 = vld [vmem:[%s451 + $0x10] sm:$0xff]
      %v455 = vld [vmem:[%s451 + $0x18] sm:$0xff]
      %v456 = vld [vmem:[%s451 + $0x20] sm:$0xff]
      %v457 = vld [vmem:[%s451 + $0x28] sm:$0xff]
      %v458 = vld [vmem:[%s451 + $0x30] sm:$0xff]
      %v459 = vld [vmem:[%s451 + $0x38] sm:$0xff]
      %v460 = vld [vmem:[%s451 + $0x40] sm:$0xff]
      %v461 = vld [vmem:[%s451 + $0x48] sm:$0xff]
      %v462 = vld [vmem:[%s451 + $0x50] sm:$0xff]
      %v463 = vld [vmem:[%s451 + $0x58] sm:$0xff]
      %v464 = vld [vmem:[%s451 + $0x60] sm:$0xff]
      %v465 = vld [vmem:[%s451 + $0x68] sm:$0xff]
      %v466 = vld [vmem:[%s451 + $0x70] sm:$0xff]
      %v467 = vld [vmem:[%s451 + $0x78] sm:$0xff]
      %468 = vmatprep.subr.mxu0 0.0
      %469 = vmatpush1.msra.mxu0 %v452
      %470 = vmatprep.subr.mxu0 0.0
      %471 = vmatpush1.msra.mxu0 %v453
      %472 = vmatprep.subr.mxu0 0.0
      %473 = vmatpush1.msra.mxu0 %v454
      %474 = vmatprep.subr.mxu0 0.0
      %475 = vmatpush1.msra.mxu0 %v455
      %476 = vmatprep.subr.mxu0 0.0
      %477 = vmatpush1.msra.mxu0 %v456
      %478 = vmatprep.subr.mxu0 0.0
      %479 = vmatpush1.msra.mxu0 %v457
      %480 = vmatprep.subr.mxu0 0.0
      %481 = vmatpush1.msra.mxu0 %v458
      %482 = vmatprep.subr.mxu0 0.0
      %483 = vmatpush1.msra.mxu0 %v459
      %484 = vmatprep.subr.mxu0 0.0
      %485 = vmatpush1.msra.mxu0 %v460
      %486 = vmatprep.subr.mxu0 0.0
      %487 = vmatpush1.msra.mxu0 %v461
      %488 = vmatprep.subr.mxu0 0.0
      %489 = vmatpush1.msra.mxu0 %v462
      %490 = vmatprep.subr.mxu0 0.0
      %491 = vmatpush1.msra.mxu0 %v463
      %492 = vmatprep.subr.mxu0 0.0
      %493 = vmatpush1.msra.mxu0 %v464
      %494 = vmatprep.subr.mxu0 0.0
      %495 = vmatpush1.msra.mxu0 %v465
      %496 = vmatprep.subr.mxu0 0.0
      %497 = vmatpush1.msra.mxu0 %v466
      %498 = vmatprep.subr.mxu0 0.0
      %499 = vmatpush1.msra.mxu0 %v467
      %500 = vmatprep.subr.mxu0 0.0
      %501 = vmatpush1.msra.mxu0 0.0
      %502 = vmatprep.subr.mxu0 0.0
      %503 = vmatpush1.msra.mxu0 0.0
      %504 = vmatprep.subr.mxu0 0.0
      %505 = vmatpush1.msra.mxu0 0.0
      %506 = vmatprep.subr.mxu0 0.0
      %507 = vmatpush1.msra.mxu0 0.0
      %508 = vmatprep.subr.mxu0 0.0
      %509 = vmatpush1.msra.mxu0 0.0
      %510 = vmatprep.subr.mxu0 0.0
      %511 = vmatpush1.msra.mxu0 0.0
      %512 = vmatprep.subr.mxu0 0.0
      %513 = vmatpush1.msra.mxu0 0.0
      %514 = vmatprep.subr.mxu0 0.0
      %515 = vmatpush1.msra.mxu0 0.0
      %516 = vmatprep.subr.mxu0 0.0
      %517 = vmatpush1.msra.mxu0 0.0
      %518 = vmatprep.subr.mxu0 0.0
      %519 = vmatpush1.msra.mxu0 0.0
      %520 = vmatprep.subr.mxu0 0.0
      %521 = vmatpush1.msra.mxu0 0.0
      %522 = vmatprep.subr.mxu0 0.0
      %523 = vmatpush1.msra.mxu0 0.0
      %524 = vmatprep.subr.mxu0 0.0
      %525 = vmatpush1.msra.mxu0 0.0
      %526 = vmatprep.subr.mxu0 0.0
      %527 = vmatpush1.msra.mxu0 0.0
      %528 = vmatprep.subr.mxu0 0.0
      %529 = vmatpush1.msra.mxu0 0.0
      %530 = vmatprep.subr.mxu0 0.0
      %531 = vmatpush1.msra.mxu0 0.0
      %532 = vmatprep.mubr.f32.mxu0 0.0
      %533 = vmatmul.mubr.f32.gmra.mrb[0].mxu0 %v333
      %v534 = vpop.f32.mrb[0].mxu0
      %v535 = vadd.f32 0.0, %v534
      %v536 = vpop.f32.mrb[0].mxu0
      %537 = vmatprep.mubr.f32.mxu0 0.0
      %538 = vmatmul.mubr.f32.gmra.mrb[0].mxu0 %v334
      %v539 = vpop.f32.mrb[0].mxu0
      %v540 = vadd.f32 0.0, %v539
      %v541 = vpop.f32.mrb[0].mxu0
      %542 = vmatprep.mubr.f32.mxu0 0.0
      %543 = vmatmul.mubr.f32.gmra.mrb[0].mxu0 %v335
      %v544 = vpop.f32.mrb[0].mxu0
      %v545 = vadd.f32 0.0, %v544
      %v546 = vpop.f32.mrb[0].mxu0
      %547 = vmatprep.mubr.f32.mxu0 0.0
      %548 = vmatmul.mubr.f32.gmra.mrb[0].mxu0 %v336
      %v549 = vpop.f32.mrb[0].mxu0
      %v550 = vadd.f32 0.0, %v549
      %v551 = vpop.f32.mrb[0].mxu0
      %552 = vmatprep.mubr.f32.mxu0 0.0
      %553 = vmatmul.mubr.f32.gmra.mrb[0].mxu0 %v337
      %v554 = vpop.f32.mrb[0].mxu0
      %v555 = vadd.f32 0.0, %v554
      %v556 = vpop.f32.mrb[0].mxu0
      %557 = vmatprep.mubr.f32.mxu0 0.0
      %558 = vmatmul.mubr.f32.gmra.mrb[0].mxu0 %v338
      %v559 = vpop.f32.mrb[0].mxu0
      %v560 = vadd.f32 0.0, %v559
      %v561 = vpop.f32.mrb[0].mxu0
      %562 = vdwg.mxu0
      %s563 = scalar_lea.vmem %s1, 256
      %v564 = vld [vmem:[%s563] sm:$0xff]
      %v565 = vld [vmem:[%s563 + $0x8] sm:$0xff]
      %v566 = vld [vmem:[%s563 + $0x10] sm:$0xff]
      %v567 = vld [vmem:[%s563 + $0x18] sm:$0xff]
      %v568 = vld [vmem:[%s563 + $0x20] sm:$0xff]
      %v569 = vld [vmem:[%s563 + $0x28] sm:$0xff]
      %v570 = vld [vmem:[%s563 + $0x30] sm:$0xff]
      %v571 = vld [vmem:[%s563 + $0x38] sm:$0xff]
      %v572 = vld [vmem:[%s563 + $0x40] sm:$0xff]
      %v573 = vld [vmem:[%s563 + $0x48] sm:$0xff]
      %v574 = vld [vmem:[%s563 + $0x50] sm:$0xff]
      %v575 = vld [vmem:[%s563 + $0x58] sm:$0xff]
      %v576 = vld [vmem:[%s563 + $0x60] sm:$0xff]
      %v577 = vld [vmem:[%s563 + $0x68] sm:$0xff]
      %v578 = vld [vmem:[%s563 + $0x70] sm:$0xff]
      %v579 = vld [vmem:[%s563 + $0x78] sm:$0xff]
      %580 = vmatprep.subr.mxu0 0.0
      %581 = vmatpush1.msra.mxu0 %v564
      %582 = vmatprep.subr.mxu0 0.0
      %583 = vmatpush1.msra.mxu0 %v565
      %584 = vmatprep.subr.mxu0 0.0
      %585 = vmatpush1.msra.mxu0 %v566
      %586 = vmatprep.subr.mxu0 0.0
      %587 = vmatpush1.msra.mxu0 %v567
      %588 = vmatprep.subr.mxu0 0.0
      %589 = vmatpush1.msra.mxu0 %v568
      %590 = vmatprep.subr.mxu0 0.0
      %591 = vmatpush1.msra.mxu0 %v569
      %592 = vmatprep.subr.mxu0 0.0
      %593 = vmatpush1.msra.mxu0 %v570
      %594 = vmatprep.subr.mxu0 0.0
      %595 = vmatpush1.msra.mxu0 %v571
      %596 = vmatprep.subr.mxu0 0.0
      %597 = vmatpush1.msra.mxu0 %v572
      %598 = vmatprep.subr.mxu0 0.0
      %599 = vmatpush1.msra.mxu0 %v573
      %600 = vmatprep.subr.mxu0 0.0
      %601 = vmatpush1.msra.mxu0 %v574
      %602 = vmatprep.subr.mxu0 0.0
      %603 = vmatpush1.msra.mxu0 %v575
      %604 = vmatprep.subr.mxu0 0.0
      %605 = vmatpush1.msra.mxu0 %v576
      %606 = vmatprep.subr.mxu0 0.0
      %607 = vmatpush1.msra.mxu0 %v577
      %608 = vmatprep.subr.mxu0 0.0
      %609 = vmatpush1.msra.mxu0 %v578
      %610 = vmatprep.subr.mxu0 0.0
      %611 = vmatpush1.msra.mxu0 %v579
      %612 = vmatprep.subr.mxu0 0.0
      %613 = vmatpush1.msra.mxu0 0.0
      %614 = vmatprep.subr.mxu0 0.0
      %615 = vmatpush1.msra.mxu0 0.0
      %616 = vmatprep.subr.mxu0 0.0
      %617 = vmatpush1.msra.mxu0 0.0
      %618 = vmatprep.subr.mxu0 0.0
      %619 = vmatpush1.msra.mxu0 0.0
      %620 = vmatprep.subr.mxu0 0.0
      %621 = vmatpush1.msra.mxu0 0.0
      %622 = vmatprep.subr.mxu0 0.0
      %623 = vmatpush1.msra.mxu0 0.0
      %624 = vmatprep.subr.mxu0 0.0
      %625 = vmatpush1.msra.mxu0 0.0
      %626 = vmatprep.subr.mxu0 0.0
      %627 = vmatpush1.msra.mxu0 0.0
      %628 = vmatprep.subr.mxu0 0.0
      %629 = vmatpush1.msra.mxu0 0.0
      %630 = vmatprep.subr.mxu0 0.0
      %631 = vmatpush1.msra.mxu0 0.0
      %632 = vmatprep.subr.mxu0 0.0
      %633 = vmatpush1.msra.mxu0 0.0
      %634 = vmatprep.subr.mxu0 0.0
      %635 = vmatpush1.msra.mxu0 0.0
      %636 = vmatprep.subr.mxu0 0.0
      %637 = vmatpush1.msra.mxu0 0.0
      %638 = vmatprep.subr.mxu0 0.0
      %639 = vmatpush1.msra.mxu0 0.0
      %640 = vmatprep.subr.mxu0 0.0
      %641 = vmatpush1.msra.mxu0 0.0
      %642 = vmatprep.subr.mxu0 0.0
      %643 = vmatpush1.msra.mxu0 0.0
      %644 = vmatprep.mubr.f32.mxu0 0.0
      %645 = vmatmul.mubr.f32.gmra.mrb[0].mxu0 %v333
      %v646 = vpop.f32.mrb[0].mxu0
      %v647 = vadd.f32 0.0, %v646
      %v648 = vpop.f32.mrb[0].mxu0
      %649 = vmatprep.mubr.f32.mxu0 0.0
      %650 = vmatmul.mubr.f32.gmra.mrb[0].mxu0 %v334
      %v651 = vpop.f32.mrb[0].mxu0
      %v652 = vadd.f32 0.0, %v651
      %v653 = vpop.f32.mrb[0].mxu0
      %654 = vmatprep.mubr.f32.mxu0 0.0
      %655 = vmatmul.mubr.f32.gmra.mrb[0].mxu0 %v335
      %v656 = vpop.f32.mrb[0].mxu0
      %v657 = vadd.f32 0.0, %v656
      %v658 = vpop.f32.mrb[0].mxu0
      %659 = vmatprep.mubr.f32.mxu0 0.0
      %660 = vmatmul.mubr.f32.gmra.mrb[0].mxu0 %v336
      %v661 = vpop.f32.mrb[0].mxu0
      %v662 = vadd.f32 0.0, %v661
      %v663 = vpop.f32.mrb[0].mxu0
      %664 = vmatprep.mubr.f32.mxu0 0.0
      %665 = vmatmul.mubr.f32.gmra.mrb[0].mxu0 %v337
      %v666 = vpop.f32.mrb[0].mxu0
      %v667 = vadd.f32 0.0, %v666
      %v668 = vpop.f32.mrb[0].mxu0
      %669 = vmatprep.mubr.f32.mxu0 0.0
      %670 = vmatmul.mubr.f32.gmra.mrb[0].mxu0 %v338
      %v671 = vpop.f32.mrb[0].mxu0
      %v672 = vadd.f32 0.0, %v671
      %v673 = vpop.f32.mrb[0].mxu0
      %674 = vdwg.mxu0
      %vm681 = vcmask 1040384
      %v682 = vrot.slane %v423, 7
      %v683 = vrot.slane %v428, 7
      %v684 = vsel %vm681, %v682, %v683
      %v685 = vrot.slane %v433, 7
      %v686 = vsel %vm681, %v683, %v685
      %v687 = vrot.slane %v438, 7
      %v688 = vsel %vm681, %v685, %v687
      %v689 = vrot.slane %v443, 7
      %v690 = vsel %vm681, %v687, %v689
      %v691 = vrot.slane %v448, 7
      %v692 = vsel %vm681, %v689, %v691
      %v699 = vsel %vm681, 0.0, %v682
      %vm706 = vcmask 1046528
      %v707 = vrot.slane %v647, 1
      %v708 = vrot.slane %v652, 1
      %v709 = vsel %vm706, %v707, %v708
      %v710 = vrot.slane %v657, 1
      %v711 = vsel %vm706, %v708, %v710
      %v712 = vrot.slane %v662, 1
      %v713 = vsel %vm706, %v710, %v712
      %v714 = vrot.slane %v667, 1
      %v715 = vsel %vm706, %v712, %v714
      %v716 = vrot.slane %v672, 1
      %v717 = vsel %vm706, %v714, %v716
      %v724 = vsel %vm706, %v716, 0.0
      %v725 = vadd.f32 %v699, %v535
      %v726 = vadd.f32 %v684, %v540
      %v727 = vadd.f32 %v686, %v545
      %v728 = vadd.f32 %v688, %v550
      %v729 = vadd.f32 %v690, %v555
      %v730 = vadd.f32 %v692, %v560
      %v731 = vadd.f32 %v725, %v709
      %v732 = vadd.f32 %v726, %v711
      %v733 = vadd.f32 %v727, %v713
      %v734 = vadd.f32 %v728, %v715
      %v735 = vadd.f32 %v729, %v717
      %v736 = vadd.f32 %v730, %v724
      %v738 = vlaneseq
      %v739 = vshrl.u32 %v738, 7
      %v740 = vsub.s32 0, %v739
      %v741 = vrot.slane %v339, %v740
      %v743 = vadd.f32 %v731, %v741
      %v744 = vadd.f32 %v732, %v741
      %v745 = vadd.f32 %v733, %v741
      %v746 = vadd.f32 %v734, %v741
      %v747 = vadd.f32 %v735, %v741
      %v748 = vadd.f32 %v736, %v741
      %v749 = vsel %vm327, 1, 0
      %v750 = vsel %vm328, 1, 0
      %v751 = vsel %vm329, 1, 0
      %v752 = vsel %vm330, 1, 0
      %v753 = vsel %vm331, 1, 0
      %v754 = vsel %vm332, 1, 0
      %vm755 = vcmp.eq.s32.totalorder %v749, 1
      %vm756 = vcmp.eq.s32.totalorder %v750, 1
      %vm757 = vcmp.eq.s32.totalorder %v751, 1
      %vm758 = vcmp.eq.s32.totalorder %v752, 1
      %vm759 = vcmp.eq.s32.totalorder %v753, 1
      %vm760 = vcmp.eq.s32.totalorder %v754, 1
      %v761 = vsel %vm755, %v743, 0.0
      %v762 = vsel %vm756, %v744, 0.0
      %v763 = vsel %vm757, %v745, 0.0
      %v764 = vsel %vm758, %v746, 0.0
      %v765 = vsel %vm759, %v747, 0.0
      %v766 = vsel %vm760, %v748, 0.0
      %767 = vst [vmem:[%s206] sm:$0xff] %v761
      %768 = vst [vmem:[%s206 + $0x8] sm:$0xff] %v762
      %769 = vst [vmem:[%s206 + $0x10] sm:$0xff] %v763
      %770 = vst [vmem:[%s206 + $0x18] sm:$0xff] %v764
      %771 = vst [vmem:[%s206 + $0x20] sm:$0xff] %v765
      %772 = vst [vmem:[%s206 + $0x28] sm:$0xff] %v766
      %v773 = vadd.f32 %v761, %v762
      %v774 = vadd.f32 %v773, %v763
      %v775 = vadd.f32 %v774, %v764
      %v776 = vadd.f32 %v775, %v765
      %v777 = vadd.f32 %v776, %v766
      %v778 = vrot.slane %v777, 4
      %v779 = vadd.f32 %v777, %v778
      %v780 = vrot.slane %v779, 2
      %v781 = vadd.f32 %v779, %v780
      %v782 = vrot.slane %v781, 1
      %v783 = vadd.f32 %v781, %v782
      %v784 = vmul.f32 %v761, %v761
      %v785 = vmul.f32 %v762, %v762
      %v786 = vmul.f32 %v763, %v763
      %v787 = vmul.f32 %v764, %v764
      %v788 = vmul.f32 %v765, %v765
      %v789 = vmul.f32 %v766, %v766
      %v790 = vadd.f32 %v784, %v785
      %v791 = vadd.f32 %v790, %v786
      %v792 = vadd.f32 %v791, %v787
      %v793 = vadd.f32 %v792, %v788
      %v794 = vadd.f32 %v793, %v789
      %v795 = vrot.slane %v794, 4
      %v796 = vadd.f32 %v794, %v795
      %v797 = vrot.slane %v796, 2
      %v798 = vadd.f32 %v796, %v797
      %v799 = vrot.slane %v798, 1
      %v800 = vadd.f32 %v798, %v799
      %v801 = vsel %vm681, %v783, %v800
      %802 = vst [vmem:[%s211] sm:$0x3] %v801
      %s803 = smul.u32 6, %s16
      %p804 = scmp.lt.s32.totalorder %s803, 11
      %s805 = scalar_select %p804, %s803, 11
      %s806 = smul.addr %s805, 8
      %s807 = scalar_lea.vmem %s3, %s806
      %p808 = scmp.lt.s32.totalorder %s16, 1
      %s809 = scalar_select %p808, %s16, 1
      %s810 = smul.addr %s809, 2
      %s811 = scalar_lea.vmem %s4, %s810
      // Predicated region
      $region33: #{conv_block_forward.3} parent=31 // pred_check
        %p812 = pneg %p102
      $region34: #{conv_block_forward.3} parent=31 // pred_check_branch
        %814 = sbr.rel (%p812) target = $region36
      $region35: #{conv_block_forward.3} parent=31 // pred_region
        %s815 = smul.u32 6, %s16
      $region36: #{conv_block_forward.3} parent=31 // pred_fallthru
        _
      // Predicated region
      $region37: #{conv_block_forward.3} parent=31 // pred_check
        %p816 = pneg %p128
      $region38: #{conv_block_forward.3} parent=31 // pred_check_branch
        %818 = sbr.rel (%p816) target = $region40
      $region39: #{conv_block_forward.3} parent=31 // pred_region
        _
      $region40: #{conv_block_forward.3} parent=31 // pred_fallthru
        _
    $region32: #{conv_block_forward.3} parent=5 // pred_fallthru
      _
    %p819 = scmp.le.s32.totalorder 2, %s11
    // Predicated region
    $region41: #{conv_block_forward.3} parent=5 // pred_check
      %p820 = pneg %p819
    $region42: #{conv_block_forward.3} parent=5 // pred_check_branch
      %822 = sbr.rel (%p820) target = $region44
    $region43: #{conv_block_forward.3} parent=5 // pred_region
      %s823 = ssub.s32 %s11, 2
      // Predicated region
      $region45: #{conv_block_forward.3} parent=43 // pred_check
        %p824 = pneg %p108
      $region46: #{conv_block_forward.3} parent=43 // pred_check_branch
        %826 = sbr.rel (%p824) target = $region48
      $region47: #{conv_block_forward.3} parent=43 // pred_region
        %s827 = smul.u32 6, %s17
        %p828 = scmp.lt.s32.totalorder %s827, 11
        %s829 = scalar_select %p828, %s827, 11
        %s830 = smul.addr %s829, 8
        %s831 = scalar_lea.vmem %s3, %s830
      $region48: #{conv_block_forward.3} parent=43 // pred_fallthru
        _
      // Predicated region
      $region49: #{conv_block_forward.3} parent=43 // pred_check
        %p832 = pneg %p134
      $region50: #{conv_block_forward.3} parent=43 // pred_check_branch
        %834 = sbr.rel (%p832) target = $region52
      $region51: #{conv_block_forward.3} parent=43 // pred_region
        %p835 = scmp.lt.s32.totalorder %s17, 1
        %s836 = scalar_select %p835, %s17, 1
        %s837 = smul.addr %s836, 2
        %s838 = scalar_lea.vmem %s4, %s837
      $region52: #{conv_block_forward.3} parent=43 // pred_fallthru
        _
    $region44: #{conv_block_forward.3} parent=5 // pred_fallthru
      _
  $region6: #{conv_block_forward.3} parent=0 // loop_footer
    %s15 = sadd.s32 1, %s11
  $region7: #{conv_block_forward.3} parent=0 // loop_footer_branch
    %10 = sbr.rel target = $region3
  $region8: #{conv_block_forward.3} parent=0 // loop_exit
    _

</llo_original>
